<compile_context>
chip_gen: v7x
topology: tpu7x:2x2x1
jax: 0.10.0
libtpu: 0.0.40
codegen_flags: <defaults>
</compile_context>

<pallas_src>
import jax
import jax.numpy as jnp
import numpy as np
from jax.experimental import pallas as pl
from jax.experimental.pallas import tpu as pltpu


def ada_gcn_kernel(x_ref, adaA_ref, a_ref, w3_ref, b3_ref, wada_ref, bada_ref, o_ref):
    # x_ref:    (bb, C_in, V, T)   native layout block
    # adaA_ref: (bb, C_in, V, V)   native layout block
    # a_ref:    (V, V)             f32, grid-resident adjacency
    # w3/wada:  (C_out, C_in)      (bf16 or f32); b3/bada: (C_out, 1) f32
    # o_ref:    (bb, C_out, V, T)  native output layout block
    bb, C_in, V, T = x_ref.shape
    C_out = w3_ref.shape[0]

    w3 = w3_ref[...]
    wada = wada_ref[...]
    b3 = b3_ref[...]          # (C_out, 1) f32
    bada = bada_ref[...]      # (C_out, 1) f32
    a = a_ref[...]            # (V, V) f32 — kept in f32, folded below (no bf16 round trip)

    for b in range(bb):       # bb <= 8, static unroll; per-sample tiles stay in vregs/VMEM
        # In-VMEM relayout of one sample to a lane-wide 2-D slab for the conv matmuls.
        x_b = x_ref[b].reshape(C_in, V * T)
        ada_b = adaA_ref[b].reshape(C_in, V * V)

        # 1x1 convs: (C_out, C_in) @ (C_in, V*T|V*V) on the MXU, f32 accumulation (+ f32 bias).
        inp2 = jnp.dot(w3, x_b, preferred_element_type=jnp.float32) + b3        # (C_out, V*T)
        ada2 = jnp.dot(wada, ada_b, preferred_element_type=jnp.float32) + bada  # (C_out, V*V)

        inp = inp2.reshape(C_out, V, T)                       # (C_out, V, T) f32
        aeff = ada2.reshape(C_out, V, V) * a[None, :, :]      # fold static A in f32 (VPU)

        # Spatial aggregation: out[o,v,t] = sum_w Aeff[o,v,w] * inp[o,w,t]
        # Batched (V,V)@(V,T) matmul over C_out — rides the otherwise idle MXU slot,
        # no V-step read-modify-write of a big accumulator through VMEM.
        out_b = jnp.einsum('ovw,owt->ovt', aeff, inp,
                           preferred_element_type=jnp.float32)

        o_ref[b] = out_b.astype(o_ref.dtype)


def _vmem_limits():
    """Generation-aware VMEM limit and per-step block budget."""
    try:
        cap = int(pltpu.get_tpu_info().vmem_capacity_bytes)
    except Exception:
        cap = 64 * 1024 * 1024                       # conservative (v7x: 64 MiB per TC)
    limit = min(cap * 3 // 4, 96 * 1024 * 1024)      # ~48 MiB on v7x, 96 MiB on v5e/v6e
    budget = limit // 3                              # headroom for Mosaic temporaries
    return limit, budget


def _choose_batch_block(N, C_in, C_out, V, T, in_itemsize, out_itemsize, budget_bytes):
    """Largest bb that (a) divides N, (b) keeps >=2 grid steps (pipelining / 2 TCs on v7x),
    (c) bounds kernel unrolling (bb <= 8), and (d) fits the per-step VMEM budget with the
    2x pipeline double-buffering of the input/output blocks accounted for."""
    io_bytes = 2 * (C_in * (V * T + V * V) * in_itemsize      # x + ada_A blocks (double-buffered)
                    + C_out * V * T * out_itemsize)           # output block (double-buffered)
    tmp_bytes = 2 * 4 * C_out * (2 * V * T + 2 * V * V)       # f32 temps + relayout copies
    per_sample = max(io_bytes + tmp_bytes, 1)
    cap = max(1, min(N, 8, budget_bytes // per_sample))
    if N >= 2:
        cap = min(cap, max(1, N // 2))                        # grid must have >= 2 steps
    for bb in range(int(cap), 0, -1):
        if N % bb == 0:
            return bb
    return 1


def ada_gcn_forward(x, ada_A, A, w3, b3, wada, bada, *,
                    cast_inputs_to_bf16=True, batch_block=None):
    """x: (N,C_in,V,T), ada_A: (N,C_in,V,V), A: (V,V), w*: (C_out,C_in), b*: (C_out,1)."""
    N, C_in, V, T = x.shape
    C_out = w3.shape[0]
    out_dtype = x.dtype

    if cast_inputs_to_bf16:
        # Halves input HBM bytes (DMA-bound, esp. v5e). Biases, A, elementwise
        # modulation and all accumulation stay f32 inside the kernel.
        x = x.astype(jnp.bfloat16)
        ada_A = ada_A.astype(jnp.bfloat16)
        w3 = w3.astype(jnp.bfloat16)
        wada = wada.astype(jnp.bfloat16)
    A = A.astype(jnp.float32)                                 # grid-resident: bf16 saves nothing
    b3 = jnp.asarray(b3, jnp.float32).reshape(C_out, 1)
    bada = jnp.asarray(bada, jnp.float32).reshape(C_out, 1)

    vmem_limit, block_budget = _vmem_limits()
    if batch_block is None:
        bb = _choose_batch_block(N, C_in, C_out, V, T,
                                 x.dtype.itemsize, jnp.dtype(out_dtype).itemsize,
                                 block_budget)
    else:
        assert N % batch_block == 0
        bb = batch_block
    grid = (N // bb,)

    flops = (2 * N * C_out * C_in * V * T          # conv3
             + 2 * N * C_out * C_in * V * V        # conv_ada
             + N * C_out * V * V                   # ada * A
             + 2 * N * C_out * V * V * T)          # spatial aggregation
    bytes_accessed = int(
        x.size * x.dtype.itemsize
        + ada_A.size * ada_A.dtype.itemsize
        + A.size * 4
        + (w3.size + wada.size) * w3.dtype.itemsize
        + (b3.size + bada.size) * 4
        + N * C_out * V * T * jnp.dtype(out_dtype).itemsize)

    return pl.pallas_call(
        ada_gcn_kernel,
        out_shape=jax.ShapeDtypeStruct((N, C_out, V, T), out_dtype),
        grid=grid,
        in_specs=[
            pl.BlockSpec((bb, C_in, V, T), lambda n: (n, 0, 0, 0)),   # x (native layout)
            pl.BlockSpec((bb, C_in, V, V), lambda n: (n, 0, 0, 0)),   # ada_A (native layout)
            pl.BlockSpec((V, V), lambda n: (0, 0)),                   # A (f32, resident)
            pl.BlockSpec((C_out, C_in), lambda n: (0, 0)),            # w3
            pl.BlockSpec((C_out, 1), lambda n: (0, 0)),               # b3
            pl.BlockSpec((C_out, C_in), lambda n: (0, 0)),            # wada
            pl.BlockSpec((C_out, 1), lambda n: (0, 0)),               # bada
        ],
        out_specs=pl.BlockSpec((bb, C_out, V, T), lambda n: (n, 0, 0, 0)),
        compiler_params=pltpu.CompilerParams(
            dimension_semantics=("parallel",),
            vmem_limit_bytes=int(vmem_limit)),
        cost_estimate=pl.CostEstimate(flops=flops, transcendentals=0,
                                      bytes_accessed=bytes_accessed),
    )(x, ada_A, A, w3, b3, wada, bada)


if __name__ == "__main__":
    N, C_in, C_out, V, T = 2, 4, 8, 16, 16

    key = jax.random.PRNGKey(0)
    k1, k2, k3, k4, k5 = jax.random.split(key, 5)

    # inputs
    x = jax.random.normal(k1, (N, C_in, V, T), jnp.float32)
    ada_A = jax.random.normal(k2, (N, C_in, V, V), jnp.float32)
    A = jax.random.normal(k3, (V, V), jnp.float32)

    # parameters: kaiming_normal_(mode='fan_out') => std = sqrt(2 / fan_out), fan_out = C_out
    std = float(np.sqrt(2.0 / C_out))
    w3 = jax.random.normal(k4, (C_out, C_in), jnp.float32) * std
    wada = jax.random.normal(k5, (C_out, C_in), jnp.float32) * std
    b3 = jnp.zeros((C_out, 1), jnp.float32)     # conv bias init to 0
    bada = jnp.zeros((C_out, 1), jnp.float32)

    def reference(xv, adav, Av, w3v, wadav):
        hi = jax.lax.Precision.HIGHEST
        inp = jnp.einsum('oc,ncvt->novt', w3v, xv, precision=hi) + b3.reshape(1, C_out, 1, 1)
        ada = jnp.einsum('oc,ncvw->novw', wadav, adav, precision=hi) + bada.reshape(1, C_out, 1, 1)
        a_eff = ada * Av[None, None, :, :]
        return jnp.einsum('novw,nowt->novt', a_eff, inp, precision=hi)

    # f32 path
    out = jax.block_until_ready(
        ada_gcn_forward(x, ada_A, A, w3, b3, wada, bada, cast_inputs_to_bf16=False))
    ref = reference(x, ada_A, A, w3, wada)
    assert out.shape == (N, C_out, V, T)
    assert np.allclose(np.asarray(out), np.asarray(ref), atol=2e-3, rtol=2e-3)

    # bf16-input path (f32 bias / A / accumulation / output); check vs bf16-cast f32 ref
    out_bf = jax.block_until_ready(
        ada_gcn_forward(x, ada_A, A, w3, b3, wada, bada, cast_inputs_to_bf16=True))
    cast = lambda t: t.astype(jnp.bfloat16).astype(jnp.float32)
    ref_bf = reference(cast(x), cast(ada_A), A, cast(w3), cast(wada))   # A stays f32 in kernel
    assert out_bf.shape == (N, C_out, V, T)
    assert np.allclose(np.asarray(out_bf), np.asarray(ref_bf), atol=5e-3, rtol=5e-3)

    print("KERNEL_OK")
</pallas_src>

<mosaic_0001>
module attributes {stable_mosaic.version = 11 : i64} {
  func.func @ada_gcn_kernel(%arg0: i32, %arg1: memref<1x4x16x16xf32, #tpu.memory_space<vmem>>, %arg2: memref<1x4x16x16xf32, #tpu.memory_space<vmem>>, %arg3: memref<16x16xf32, #tpu.memory_space<vmem>>, %arg4: memref<8x4xf32, #tpu.memory_space<vmem>>, %arg5: memref<8x1xf32, #tpu.memory_space<vmem>>, %arg6: memref<8x4xf32, #tpu.memory_space<vmem>>, %arg7: memref<8x1xf32, #tpu.memory_space<vmem>>, %arg8: memref<1x8x16x16xf32, #tpu.memory_space<vmem>>) attributes {dimension_semantics = [#tpu.dimension_semantics<parallel>], iteration_bounds = array<i64: 2>, scalar_prefetch = 0 : i64, scratch_operands = 0 : i64, tpu.core_type = #tpu.core_type<tc>, window_params = [{transform_indices = @transform_0, window_bounds = array<i64: 1, 4, 16, 16>}, {transform_indices = @transform_1, window_bounds = array<i64: 1, 4, 16, 16>}, {pipeline_mode = #tpu.pipeline_mode<synchronous>, transform_indices = @transform_2, window_bounds = array<i64: 16, 16>}, {pipeline_mode = #tpu.pipeline_mode<synchronous>, transform_indices = @transform_3, window_bounds = array<i64: 8, 4>}, {pipeline_mode = #tpu.pipeline_mode<synchronous>, transform_indices = @transform_4, window_bounds = array<i64: 8, 1>}, {pipeline_mode = #tpu.pipeline_mode<synchronous>, transform_indices = @transform_5, window_bounds = array<i64: 8, 4>}, {pipeline_mode = #tpu.pipeline_mode<synchronous>, transform_indices = @transform_6, window_bounds = array<i64: 8, 1>}, {transform_indices = @transform_7, window_bounds = array<i64: 1, 8, 16, 16>}]} {
    %c0 = arith.constant 0 : index
    %c0_0 = arith.constant 0 : index
    %0 = vector.load %arg4[%c0, %c0_0] : memref<8x4xf32, #tpu.memory_space<vmem>>, vector<8x4xf32>
    %c0_1 = arith.constant 0 : index
    %c0_2 = arith.constant 0 : index
    %1 = vector.load %arg6[%c0_1, %c0_2] : memref<8x4xf32, #tpu.memory_space<vmem>>, vector<8x4xf32>
    %c0_3 = arith.constant 0 : index
    %c0_4 = arith.constant 0 : index
    %2 = vector.load %arg5[%c0_3, %c0_4] : memref<8x1xf32, #tpu.memory_space<vmem>>, vector<8x1xf32>
    %c0_5 = arith.constant 0 : index
    %c0_6 = arith.constant 0 : index
    %3 = vector.load %arg7[%c0_5, %c0_6] : memref<8x1xf32, #tpu.memory_space<vmem>>, vector<8x1xf32>
    %c0_7 = arith.constant 0 : index
    %c0_8 = arith.constant 0 : index
    %4 = vector.load %arg3[%c0_7, %c0_8] : memref<16x16xf32, #tpu.memory_space<vmem>>, vector<16x16xf32>
    %c0_9 = arith.constant 0 : index
    %c0_10 = arith.constant 0 : index
    %c0_11 = arith.constant 0 : index
    %c0_12 = arith.constant 0 : index
    %5 = vector.load %arg1[%c0_9, %c0_10, %c0_11, %c0_12] : memref<1x4x16x16xf32, #tpu.memory_space<vmem>>, vector<1x4x16x16xf32>
    %6 = vector.shape_cast %5 : vector<1x4x16x16xf32> to vector<4x16x16xf32>
    %7 = vector.shape_cast %6 : vector<4x16x16xf32> to vector<4x256xf32>
    %c0_13 = arith.constant 0 : index
    %c0_14 = arith.constant 0 : index
    %c0_15 = arith.constant 0 : index
    %c0_16 = arith.constant 0 : index
    %8 = vector.load %arg2[%c0_13, %c0_14, %c0_15, %c0_16] : memref<1x4x16x16xf32, #tpu.memory_space<vmem>>, vector<1x4x16x16xf32>
    %9 = vector.shape_cast %8 : vector<1x4x16x16xf32> to vector<4x16x16xf32>
    %10 = vector.shape_cast %9 : vector<4x16x16xf32> to vector<4x256xf32>
    %cst = arith.constant dense<0.000000e+00> : vector<8x256xf32>
    %11 = tpu.matmul %0, %7, %cst {dimension_numbers = #tpu.dot_dimension_numbers<[1], [0], [0], [1], [0, 0, 1, 1], [], []>} : vector<8x4xf32>, vector<4x256xf32>, vector<8x256xf32> -> vector<8x256xf32>
    %12 = vector.broadcast %2 : vector<8x1xf32> to vector<8x256xf32>
    %13 = arith.addf %11, %12 : vector<8x256xf32>
    %cst_17 = arith.constant dense<0.000000e+00> : vector<8x256xf32>
    %14 = tpu.matmul %1, %10, %cst_17 {dimension_numbers = #tpu.dot_dimension_numbers<[1], [0], [0], [1], [0, 0, 1, 1], [], []>} : vector<8x4xf32>, vector<4x256xf32>, vector<8x256xf32> -> vector<8x256xf32>
    %15 = vector.broadcast %3 : vector<8x1xf32> to vector<8x256xf32>
    %16 = arith.addf %14, %15 : vector<8x256xf32>
    %17 = vector.shape_cast %13 : vector<8x256xf32> to vector<8x16x16xf32>
    %18 = vector.shape_cast %16 : vector<8x256xf32> to vector<8x16x16xf32>
    %19 = vector.shape_cast %4 : vector<16x16xf32> to vector<1x16x16xf32>
    %20 = vector.broadcast %19 : vector<1x16x16xf32> to vector<8x16x16xf32>
    %21 = arith.mulf %18, %20 : vector<8x16x16xf32>
    "tpu.trace_start"() <{level = 10 : i32, message = "ovw,owt->ovt"}> : () -> ()
    %cst_18 = arith.constant dense<0.000000e+00> : vector<8x16x16xf32>
    %22 = tpu.matmul %21, %17, %cst_18 {dimension_numbers = #tpu.dot_dimension_numbers<[2], [1], [1], [2], [0, 0, 0, 1, 1, 2], [0], [0]>} : vector<8x16x16xf32>, vector<8x16x16xf32>, vector<8x16x16xf32> -> vector<8x16x16xf32>
    "tpu.trace_stop"() : () -> ()
    %c0_19 = arith.constant 0 : index
    %c0_20 = arith.constant 0 : index
    %c0_21 = arith.constant 0 : index
    %c0_22 = arith.constant 0 : index
    %23 = vector.load %arg8[%c0_19, %c0_20, %c0_21, %c0_22] : memref<1x8x16x16xf32, #tpu.memory_space<vmem>>, vector<1x8x16x16xf32>
    %24 = vector.shape_cast %23 : vector<1x8x16x16xf32> to vector<8x16x16xf32>
    %25 = vector.shape_cast %22 : vector<8x16x16xf32> to vector<1x8x16x16xf32>
    tpu.vector_store %arg8[%c0_19, %c0_20, %c0_21, %c0_22], %25 {strides = array<i32>} : memref<1x8x16x16xf32, #tpu.memory_space<vmem>>, vector<1x8x16x16xf32>,
    return
  }
  func.func @transform_0(%arg0: i32) -> (i32, i32, i32, i32) {
    %c0_i32 = arith.constant 0 : i32
    %c0_i32_0 = arith.constant 0 : i32
    %c0_i32_1 = arith.constant 0 : i32
    %c0_i32_2 = arith.constant 0 : i32
    return %arg0, %c0_i32, %c0_i32_0, %c0_i32_1 : i32, i32, i32, i32
  }
  func.func @transform_1(%arg0: i32) -> (i32, i32, i32, i32) {
    %c0_i32 = arith.constant 0 : i32
    %c0_i32_0 = arith.constant 0 : i32
    %c0_i32_1 = arith.constant 0 : i32
    %c0_i32_2 = arith.constant 0 : i32
    return %arg0, %c0_i32, %c0_i32_0, %c0_i32_1 : i32, i32, i32, i32
  }
  func.func @transform_2(%arg0: i32) -> (i32, i32) {
    %c0_i32 = arith.constant 0 : i32
    %c0_i32_0 = arith.constant 0 : i32
    %c0_i32_1 = arith.constant 0 : i32
    return %c0_i32, %c0_i32_0 : i32, i32
  }
  func.func @transform_3(%arg0: i32) -> (i32, i32) {
    %c0_i32 = arith.constant 0 : i32
    %c0_i32_0 = arith.constant 0 : i32
    %c0_i32_1 = arith.constant 0 : i32
    return %c0_i32, %c0_i32_0 : i32, i32
  }
  func.func @transform_4(%arg0: i32) -> (i32, i32) {
    %c0_i32 = arith.constant 0 : i32
    %c0_i32_0 = arith.constant 0 : i32
    %c0_i32_1 = arith.constant 0 : i32
    return %c0_i32, %c0_i32_0 : i32, i32
  }
  func.func @transform_5(%arg0: i32) -> (i32, i32) {
    %c0_i32 = arith.constant 0 : i32
    %c0_i32_0 = arith.constant 0 : i32
    %c0_i32_1 = arith.constant 0 : i32
    return %c0_i32, %c0_i32_0 : i32, i32
  }
  func.func @transform_6(%arg0: i32) -> (i32, i32) {
    %c0_i32 = arith.constant 0 : i32
    %c0_i32_0 = arith.constant 0 : i32
    %c0_i32_1 = arith.constant 0 : i32
    return %c0_i32, %c0_i32_0 : i32, i32
  }
  func.func @transform_7(%arg0: i32) -> (i32, i32, i32, i32) {
    %c0_i32 = arith.constant 0 : i32
    %c0_i32_0 = arith.constant 0 : i32
    %c0_i32_1 = arith.constant 0 : i32
    %c0_i32_2 = arith.constant 0 : i32
    return %arg0, %c0_i32, %c0_i32_0, %c0_i32_1 : i32, i32, i32, i32
  }
}

</mosaic_0001>

<llo_original>
// kernel: tpu_custom_call.1
$region0: #{tpu_custom_call.1}
  #allocation0 [shape = 'u32[]', space=smem, size = 0x4, offset = 0x4, fixed_abs, tag = 'smem constant byte address 0x4 - core index']
  #allocation1 [shape = 'u32[144,128]{1,0:T(1,128)}', space=vmem, size = 0x12000, scoped, tag = 'internal scratch']
  %s0 = inlined_call_operand.hbm [shape: f32[2,4,16,16], index: 0, kind: input, shape index: {}]
  %s1 = inlined_call_operand.hbm [shape: f32[2,4,16,16], index: 1, kind: input, shape index: {}]
  %s2 = inlined_call_operand.vmem [shape: f32[16,16], index: 2, kind: input, shape index: {}]
  %s3 = inlined_call_operand.vmem [shape: f32[8,4], index: 3, kind: input, shape index: {}]
  %s4 = inlined_call_operand.vmem [shape: f32[8,1], index: 4, kind: input, shape index: {}]
  %s5 = inlined_call_operand.vmem [shape: f32[8,4], index: 5, kind: input, shape index: {}]
  %s6 = inlined_call_operand.vmem [shape: f32[8,1], index: 6, kind: input, shape index: {}]
  %s7 = inlined_call_operand.hbm [shape: f32[2,8,16,16], index: 7, kind: output, shape index: {}]
  %s8 = sld [smem:[#allocation0]]
  $region69: #{tpu_custom_call.1} parent=0
    _
  %s10 = ssub.s32 1, %s8
  %s11 = scalar_select 0, %s10, %s8
  $region1: #{tpu_custom_call.1} parent=0
    #allocation2 [shape = 'u8[65536]{0}', space=vmem, size = 0x10000, scoped, tag = 'input window, operand 0']
    #allocation3 [shape = 's32[2]{0}', space=sflag, size = 0x8, scoped, tag = 'scoped memory for tpu_custom_call.1']
    #allocation4 [shape = 's32[2]{0}', space=sflag, size = 0x8, scoped, tag = 'scoped memory for tpu_custom_call.1']
    #allocation5 [shape = 'u8[65536]{0}', space=vmem, size = 0x10000, scoped, tag = 'input window, operand 1']
    #allocation6 [shape = 's32[2]{0}', space=sflag, size = 0x8, scoped, tag = 'scoped memory for tpu_custom_call.1']
    #allocation7 [shape = 'u8[131072]{0}', space=vmem, size = 0x20000, scoped, tag = 'output window, operand 0']
    %12 = vsyncpa [#allocation3], 0
    %s13 = scalar_lea.sflag [#allocation3], 1
    %14 = vsyncpa %s13, 0
    %15 = vsyncpa [#allocation6], 0
    %s16 = scalar_lea.sflag [#allocation6], 1
    %17 = vsyncpa %s16, 0
    %18 = vsyncpa [#allocation4], 0
    %s19 = scalar_lea.sflag [#allocation4], 1
    %20 = vsyncpa %s19, 0
    loop: start=0, step=1, limit=4
    $region2: #{tpu_custom_call.1} parent=1 // loop_pre_header
      _
    $region3: #{tpu_custom_call.1} parent=1 // loop_header
      %s22 = sphi 0, %s26
      %p23 = scmp.ge.s32.totalorder %s22, 4
      %s32 = sphi 0, %s34
      %s35 = sphi 0, %s32
      %s36 = sphi 0, %s35
      %s52 = sphi 0, %s36
      %s58 = sphi 0, %s60
      %s61 = sphi 0, %s58
      %s62 = sphi 0, %s61
      %s78 = sphi 0, %s62
      %s82 = sphi 0, %s82
      %s84 = sphi 0, %s82
      %s85 = sphi 0, %s84
      %s99 = sphi 0, %s85
      %s103 = sphi 0, %s103
      %s105 = sphi 0, %s103
      %s106 = sphi 0, %s105
      %s120 = sphi 0, %s106
      %s124 = sphi 0, %s124
      %s126 = sphi 0, %s124
      %s127 = sphi 0, %s126
      %s141 = sphi 0, %s127
      %s145 = sphi 0, %s145
      %s147 = sphi 0, %s145
      %s148 = sphi 0, %s147
      %s162 = sphi 0, %s148
      %s166 = sphi 0, %s166
      %s168 = sphi 0, %s166
      %s169 = sphi 0, %s168
      %s183 = sphi 0, %s169
      %s189 = sphi 0, %s191
      %s192 = sphi 0, %s189
      %s193 = sphi 0, %s192
      %s209 = sphi 0, %s193
    $region4: #{tpu_custom_call.1} parent=1 // loop_header_branch
      %25 = sbr.rel (%p23) target = $region8
    $region5: #{tpu_custom_call.1} parent=1 // loop_body
      %s27 = ssub.s32 %s22, 1
      %s28 = ssub.s32 %s22, 2
      %s29 = sadd.s32 %s22, 1
      %s30 = ssub.s32 %s22, %s29
      %p31 = scmp.eq.s32.totalorder %s30, 0
      %s33 = sadd.s32 %s32, 1
      %s34 = scalar_select %p31, %s32, %s33
      %p37 = pneg %p31
      %p38 = scmp.eq.s32.totalorder %s22, 1
      %p39 = por %p37, %p38
      %p40 = scmp.ne.s32.totalorder %s32, %s35
      %p41 = scmp.eq.s32.totalorder %s22, 0
      %p42 = por %p40, %p41
      %p43 = scmp.ne.s32.totalorder %s32, %s35
      %p44 = scmp.eq.s32.totalorder %s27, 1
      %p45 = por %p43, %p44
      %p46 = scmp.ne.s32.totalorder %s35, %s36
      %p47 = scmp.eq.s32.totalorder %s27, 0
      %p48 = por %p46, %p47
      %p49 = scmp.ne.s32.totalorder %s35, %s36
      %p50 = scmp.eq.s32.totalorder %s28, 1
      %p51 = por %p49, %p50
      %p53 = scmp.ne.s32.totalorder %s36, %s52
      %p54 = scmp.eq.s32.totalorder %s28, 0
      %p55 = por %p53, %p54
      %s56 = ssub.s32 %s22, %s29
      %p57 = scmp.eq.s32.totalorder %s56, 0
      %s59 = sadd.s32 %s58, 1
      %s60 = scalar_select %p57, %s58, %s59
      %p63 = pneg %p57
      %p64 = scmp.eq.s32.totalorder %s22, 1
      %p65 = por %p63, %p64
      %p66 = scmp.ne.s32.totalorder %s58, %s61
      %p67 = scmp.eq.s32.totalorder %s22, 0
      %p68 = por %p66, %p67
      %p69 = scmp.ne.s32.totalorder %s58, %s61
      %p70 = scmp.eq.s32.totalorder %s27, 1
      %p71 = por %p69, %p70
      %p72 = scmp.ne.s32.totalorder %s61, %s62
      %p73 = scmp.eq.s32.totalorder %s27, 0
      %p74 = por %p72, %p73
      %p75 = scmp.ne.s32.totalorder %s61, %s62
      %p76 = scmp.eq.s32.totalorder %s28, 1
      %p77 = por %p75, %p76
      %p79 = scmp.ne.s32.totalorder %s62, %s78
      %p80 = scmp.eq.s32.totalorder %s28, 0
      %p81 = por %p79, %p80
      %s83 = sadd.s32 %s82, 1
      %p86 = scmp.eq.s32.totalorder %s22, 1
      %p87 = scmp.ne.s32.totalorder %s82, %s84
      %p88 = scmp.eq.s32.totalorder %s22, 0
      %p89 = por %p87, %p88
      %p90 = scmp.ne.s32.totalorder %s82, %s84
      %p91 = scmp.eq.s32.totalorder %s27, 1
      %p92 = por %p90, %p91
      %p93 = scmp.ne.s32.totalorder %s84, %s85
      %p94 = scmp.eq.s32.totalorder %s27, 0
      %p95 = por %p93, %p94
      %p96 = scmp.ne.s32.totalorder %s84, %s85
      %p97 = scmp.eq.s32.totalorder %s28, 1
      %p98 = por %p96, %p97
      %p100 = scmp.ne.s32.totalorder %s85, %s99
      %p101 = scmp.eq.s32.totalorder %s28, 0
      %p102 = por %p100, %p101
      %s104 = sadd.s32 %s103, 1
      %p107 = scmp.eq.s32.totalorder %s22, 1
      %p108 = scmp.ne.s32.totalorder %s103, %s105
      %p109 = scmp.eq.s32.totalorder %s22, 0
      %p110 = por %p108, %p109
      %p111 = scmp.ne.s32.totalorder %s103, %s105
      %p112 = scmp.eq.s32.totalorder %s27, 1
      %p113 = por %p111, %p112
      %p114 = scmp.ne.s32.totalorder %s105, %s106
      %p115 = scmp.eq.s32.totalorder %s27, 0
      %p116 = por %p114, %p115
      %p117 = scmp.ne.s32.totalorder %s105, %s106
      %p118 = scmp.eq.s32.totalorder %s28, 1
      %p119 = por %p117, %p118
      %p121 = scmp.ne.s32.totalorder %s106, %s120
      %p122 = scmp.eq.s32.totalorder %s28, 0
      %p123 = por %p121, %p122
      %s125 = sadd.s32 %s124, 1
      %p128 = scmp.eq.s32.totalorder %s22, 1
      %p129 = scmp.ne.s32.totalorder %s124, %s126
      %p130 = scmp.eq.s32.totalorder %s22, 0
      %p131 = por %p129, %p130
      %p132 = scmp.ne.s32.totalorder %s124, %s126
      %p133 = scmp.eq.s32.totalorder %s27, 1
      %p134 = por %p132, %p133
      %p135 = scmp.ne.s32.totalorder %s126, %s127
      %p136 = scmp.eq.s32.totalorder %s27, 0
      %p137 = por %p135, %p136
      %p138 = scmp.ne.s32.totalorder %s126, %s127
      %p139 = scmp.eq.s32.totalorder %s28, 1
      %p140 = por %p138, %p139
      %p142 = scmp.ne.s32.totalorder %s127, %s141
      %p143 = scmp.eq.s32.totalorder %s28, 0
      %p144 = por %p142, %p143
      %s146 = sadd.s32 %s145, 1
      %p149 = scmp.eq.s32.totalorder %s22, 1
      %p150 = scmp.ne.s32.totalorder %s145, %s147
      %p151 = scmp.eq.s32.totalorder %s22, 0
      %p152 = por %p150, %p151
      %p153 = scmp.ne.s32.totalorder %s145, %s147
      %p154 = scmp.eq.s32.totalorder %s27, 1
      %p155 = por %p153, %p154
      %p156 = scmp.ne.s32.totalorder %s147, %s148
      %p157 = scmp.eq.s32.totalorder %s27, 0
      %p158 = por %p156, %p157
      %p159 = scmp.ne.s32.totalorder %s147, %s148
      %p160 = scmp.eq.s32.totalorder %s28, 1
      %p161 = por %p159, %p160
      %p163 = scmp.ne.s32.totalorder %s148, %s162
      %p164 = scmp.eq.s32.totalorder %s28, 0
      %p165 = por %p163, %p164
      %s167 = sadd.s32 %s166, 1
      %p170 = scmp.eq.s32.totalorder %s22, 1
      %p171 = scmp.ne.s32.totalorder %s166, %s168
      %p172 = scmp.eq.s32.totalorder %s22, 0
      %p173 = por %p171, %p172
      %p174 = scmp.ne.s32.totalorder %s166, %s168
      %p175 = scmp.eq.s32.totalorder %s27, 1
      %p176 = por %p174, %p175
      %p177 = scmp.ne.s32.totalorder %s168, %s169
      %p178 = scmp.eq.s32.totalorder %s27, 0
      %p179 = por %p177, %p178
      %p180 = scmp.ne.s32.totalorder %s168, %s169
      %p181 = scmp.eq.s32.totalorder %s28, 1
      %p182 = por %p180, %p181
      %p184 = scmp.ne.s32.totalorder %s169, %s183
      %p185 = scmp.eq.s32.totalorder %s28, 0
      %p186 = por %p184, %p185
      %s187 = ssub.s32 %s22, %s29
      %p188 = scmp.eq.s32.totalorder %s187, 0
      %s190 = sadd.s32 %s189, 1
      %s191 = scalar_select %p188, %s189, %s190
      %p194 = pneg %p188
      %p195 = scmp.eq.s32.totalorder %s22, 1
      %p196 = por %p194, %p195
      %p197 = scmp.ne.s32.totalorder %s189, %s192
      %p198 = scmp.eq.s32.totalorder %s22, 0
      %p199 = por %p197, %p198
      %p200 = scmp.ne.s32.totalorder %s189, %s192
      %p201 = scmp.eq.s32.totalorder %s27, 1
      %p202 = por %p200, %p201
      %p203 = scmp.ne.s32.totalorder %s192, %s193
      %p204 = scmp.eq.s32.totalorder %s27, 0
      %p205 = por %p203, %p204
      %p206 = scmp.ne.s32.totalorder %s192, %s193
      %p207 = scmp.eq.s32.totalorder %s28, 1
      %p208 = por %p206, %p207
      %p210 = scmp.ne.s32.totalorder %s193, %s209
      %p211 = scmp.eq.s32.totalorder %s28, 0
      %p212 = por %p210, %p211
      %p213 = scmp.le.s32.totalorder 1, %s22
      %p214 = scmp.lt.s32.totalorder %s22, 3
      %p215 = pnand %p213, %p214
      %p216 = pneg %p215
      // Predicated region
      $region9: #{tpu_custom_call.1} parent=5 // pred_check
        _
      $region10: #{tpu_custom_call.1} parent=5 // pred_check_branch
        %218 = sbr.rel (%p215) target = $region12
      $region11: #{tpu_custom_call.1} parent=5 // pred_region
        %s219 = ssub.s32 %s22, 1
        // Predicated region
        $region13: #{tpu_custom_call.1} parent=11 // pred_check
          %p220 = pneg %p95
        $region14: #{tpu_custom_call.1} parent=11 // pred_check_branch
          %222 = sbr.rel (%p220) target = $region16
        $region15: #{tpu_custom_call.1} parent=11 // pred_region
          _
        $region16: #{tpu_custom_call.1} parent=11 // pred_fallthru
          _
        // Predicated region
        $region17: #{tpu_custom_call.1} parent=11 // pred_check
          %p223 = pneg %p116
        $region18: #{tpu_custom_call.1} parent=11 // pred_check_branch
          %225 = sbr.rel (%p223) target = $region20
        $region19: #{tpu_custom_call.1} parent=11 // pred_region
          _
        $region20: #{tpu_custom_call.1} parent=11 // pred_fallthru
          _
        // Predicated region
        $region21: #{tpu_custom_call.1} parent=11 // pred_check
          %p226 = pneg %p137
        $region22: #{tpu_custom_call.1} parent=11 // pred_check_branch
          %228 = sbr.rel (%p226) target = $region24
        $region23: #{tpu_custom_call.1} parent=11 // pred_region
          _
        $region24: #{tpu_custom_call.1} parent=11 // pred_fallthru
          _
        // Predicated region
        $region25: #{tpu_custom_call.1} parent=11 // pred_check
          %p229 = pneg %p158
        $region26: #{tpu_custom_call.1} parent=11 // pred_check_branch
          %231 = sbr.rel (%p229) target = $region28
        $region27: #{tpu_custom_call.1} parent=11 // pred_region
          _
        $region28: #{tpu_custom_call.1} parent=11 // pred_fallthru
          _
        // Predicated region
        $region29: #{tpu_custom_call.1} parent=11 // pred_check
          %p232 = pneg %p179
        $region30: #{tpu_custom_call.1} parent=11 // pred_check_branch
          %234 = sbr.rel (%p232) target = $region32
        $region31: #{tpu_custom_call.1} parent=11 // pred_region
          _
        $region32: #{tpu_custom_call.1} parent=11 // pred_fallthru
          _
      $region12: #{tpu_custom_call.1} parent=5 // pred_fallthru
        _
      %p235 = scmp.lt.s32.totalorder %s22, 2
      // Predicated region
      $region33: #{tpu_custom_call.1} parent=5 // pred_check
        %p236 = pneg %p235
      $region34: #{tpu_custom_call.1} parent=5 // pred_check_branch
        %238 = sbr.rel (%p236) target = $region36
      $region35: #{tpu_custom_call.1} parent=5 // pred_region
        // Predicated region
        $region37: #{tpu_custom_call.1} parent=35 // pred_check
          %p239 = pneg %p42
        $region38: #{tpu_custom_call.1} parent=35 // pred_check_branch
          %241 = sbr.rel (%p239) target = $region40
        $region39: #{tpu_custom_call.1} parent=35 // pred_region
          %s242 = sand.u32 %s32, 1
          %s243 = scalar_lea.sflag [#allocation3], %s242
          %s244 = sand.u32 %s32, 1
          %s245 = smul.addr %s244, 64
          %s246 = scalar_lea.vmem [#allocation2], %s245
          %s248 = ssub.s32 1024, 1024
          %249 = vsyncadd %s243, %s248
          %s250 = smul.addr %s22, 8
          %s251 = smul.addr %s250, 128
          %s252 = scalar_lea.hbm %s0, %s251
          %s253 = sshll.u32 %s246, 4
          %s254 = int_to_ptr.vmem [resolvable:$true] %s253
          %259 = dma.hbm_to_vmem [thread:$0]  %s252, 1024, %s254, %s243, 128, 128, 8
        $region40: #{tpu_custom_call.1} parent=35 // pred_fallthru
          _
        // Predicated region
        $region41: #{tpu_custom_call.1} parent=35 // pred_check
          %p260 = pneg %p68
        $region42: #{tpu_custom_call.1} parent=35 // pred_check_branch
          %262 = sbr.rel (%p260) target = $region44
        $region43: #{tpu_custom_call.1} parent=35 // pred_region
          %s263 = sand.u32 %s58, 1
          %s264 = scalar_lea.sflag [#allocation6], %s263
          %s265 = sand.u32 %s58, 1
          %s266 = smul.addr %s265, 64
          %s267 = scalar_lea.vmem [#allocation5], %s266
          %s269 = ssub.s32 1024, 1024
          %270 = vsyncadd %s264, %s269
          %s271 = smul.addr %s22, 8
          %s272 = smul.addr %s271, 128
          %s273 = scalar_lea.hbm %s1, %s272
          %s274 = sshll.u32 %s267, 4
          %s275 = int_to_ptr.vmem [resolvable:$true] %s274
          %280 = dma.hbm_to_vmem [thread:$0]  %s273, 1024, %s275, %s264, 128, 128, 8
        $region44: #{tpu_custom_call.1} parent=35 // pred_fallthru
          _
      $region36: #{tpu_custom_call.1} parent=5 // pred_fallthru
        _
      %p281 = scmp.le.s32.totalorder 1, %s22
      %p282 = scmp.lt.s32.totalorder %s22, 3
      %p283 = pnand %p281, %p282
      %p284 = pneg %p283
      // Predicated region
      $region45: #{tpu_custom_call.1} parent=5 // pred_check
        _
      $region46: #{tpu_custom_call.1} parent=5 // pred_check_branch
        %286 = sbr.rel (%p283) target = $region48
      $region47: #{tpu_custom_call.1} parent=5 // pred_region
        %s287 = ssub.s32 %s22, 1
        %s288 = sand.u32 %s35, 1
        %s289 = scalar_lea.sflag [#allocation3], %s288
        %s290 = sand.u32 %s35, 1
        %s291 = smul.addr %s290, 64
        %s292 = scalar_lea.vmem [#allocation2], %s291
        // Predicated region
        $region49: #{tpu_custom_call.1} parent=47 // pred_check
          %p293 = pneg %p48
        $region50: #{tpu_custom_call.1} parent=47 // pred_check_branch
          %295 = sbr.rel (%p293) target = $region52
        $region51: #{tpu_custom_call.1} parent=47 // pred_region
          %296 = dma.done %s289, 1024
        $region52: #{tpu_custom_call.1} parent=47 // pred_fallthru
          _
        %s297 = sand.u32 %s61, 1
        %s298 = scalar_lea.sflag [#allocation6], %s297
        %s299 = sand.u32 %s61, 1
        %s300 = smul.addr %s299, 64
        %s301 = scalar_lea.vmem [#allocation5], %s300
        // Predicated region
        $region53: #{tpu_custom_call.1} parent=47 // pred_check
          %p302 = pneg %p74
        $region54: #{tpu_custom_call.1} parent=47 // pred_check_branch
          %304 = sbr.rel (%p302) target = $region56
        $region55: #{tpu_custom_call.1} parent=47 // pred_region
          %305 = dma.done %s298, 1024
        $region56: #{tpu_custom_call.1} parent=47 // pred_fallthru
          _
        %s306 = sand.u32 %s35, 1
        %s307 = scalar_lea.sflag [#allocation3], %s306
        %s308 = sand.u32 %s35, 1
        %s309 = smul.addr %s308, 64
        %s310 = scalar_lea.vmem [#allocation2], %s309
        %p311 = pneg %p48
        %p312 = pneg %p45
        %s313 = sand.u32 %s61, 1
        %s314 = scalar_lea.sflag [#allocation6], %s313
        %s315 = sand.u32 %s61, 1
        %s316 = smul.addr %s315, 64
        %s317 = scalar_lea.vmem [#allocation5], %s316
        %p318 = pneg %p74
        %p319 = pneg %p71
        %p320 = pneg %p95
        %p321 = pneg %p92
        %p322 = pneg %p116
        %p323 = pneg %p113
        %p324 = pneg %p137
        %p325 = pneg %p134
        %p326 = pneg %p158
        %p327 = pneg %p155
        %p328 = pneg %p179
        %p329 = pneg %p176
        %p330 = pneg %p205
        %p331 = pneg %p202
        %s332 = sand.u32 %s192, 1
        %s333 = scalar_lea.sflag [#allocation4], %s332
        %s334 = sand.u32 %s192, 1
        %s335 = smul.addr %s334, 128
        %s336 = scalar_lea.vmem [#allocation7], %s335
        %v337 = vld [vmem:[%s3] sm:$0xff]
        %v338 = vld [vmem:[%s5] sm:$0xff]
        %v339 = vld [vmem:[%s4] sm:$0xff]
        %v340 = vld [vmem:[%s6] sm:$0xff]
        %v341 = vld [vmem:[%s2] sm:$0xff]
        %v342 = vld [vmem:[%s2 + $0x8] sm:$0xff]
        %v343 = vld [vmem:[%s292] sm:$0xff]
        %v344 = vld [vmem:[%s292 + $0x8] sm:$0xff]
        %v345 = vld [vmem:[%s292 + $0x10] sm:$0xff]
        %v346 = vld [vmem:[%s292 + $0x18] sm:$0xff]
        %v347 = vld [vmem:[%s292 + $0x20] sm:$0xff]
        %v348 = vld [vmem:[%s292 + $0x28] sm:$0xff]
        %v349 = vld [vmem:[%s292 + $0x30] sm:$0xff]
        %v350 = vld [vmem:[%s292 + $0x38] sm:$0xff]
        %v351 = vcombine.low %v343, %v347
        %v352 = vcombine.high %v343, %v347
        %v354 = vunpack.c.l.s4 1983009808
        %v355 = vunpack.c.0.s8 %v354
        %v356 = vlaneseq
        %v357 = vshrl.u32 %v356, 7
        %v358 = vsub.s32 %v355, %v357
        %v359 = vrot.slane %v351, %v358
        %v361 = vunpack.c.l.s4 1983009808
        %v362 = vunpack.c.0.s8 %v361
        %v363 = vlaneseq
        %v364 = vshrl.u32 %v363, 7
        %v365 = vsub.s32 %v362, %v364
        %v366 = vrot.slane %v352, %v365
        %v367 = vcombine.low %v345, %v349
        %v368 = vcombine.high %v345, %v349
        %v370 = vunpack.c.l.s4 1983009808
        %v371 = vunpack.c.0.s8 %v370
        %v372 = vlaneseq
        %v373 = vshrl.u32 %v372, 7
        %v374 = vsub.s32 %v371, %v373
        %v375 = vrot.slane %v367, %v374
        %v377 = vunpack.c.l.s4 1983009808
        %v378 = vunpack.c.0.s8 %v377
        %v379 = vlaneseq
        %v380 = vshrl.u32 %v379, 7
        %v381 = vsub.s32 %v378, %v380
        %v382 = vrot.slane %v368, %v381
        %v383 = vcombine.low %v359, %v375
        %v384 = vcombine.high %v359, %v375
        %v386 = vunpack.c.l.s4 1934713408
        %v387 = vunpack.c.0.s8 %v386
        %v388 = vlaneseq
        %v389 = vshrl.u32 %v388, 7
        %v390 = vsub.s32 %v387, %v389
        %v391 = vrot.slane %v383, %v390
        %v393 = vunpack.c.l.s4 1934713408
        %v394 = vunpack.c.0.s8 %v393
        %v395 = vlaneseq
        %v396 = vshrl.u32 %v395, 7
        %v397 = vsub.s32 %v394, %v396
        %v398 = vrot.slane %v384, %v397
        %v399 = vcombine.low %v366, %v382
        %v400 = vcombine.high %v366, %v382
        %v402 = vunpack.c.l.s4 1934713408
        %v403 = vunpack.c.0.s8 %v402
        %v404 = vlaneseq
        %v405 = vshrl.u32 %v404, 7
        %v406 = vsub.s32 %v403, %v405
        %v407 = vrot.slane %v399, %v406
        %v409 = vunpack.c.l.s4 1934713408
        %v410 = vunpack.c.0.s8 %v409
        %v411 = vlaneseq
        %v412 = vshrl.u32 %v411, 7
        %v413 = vsub.s32 %v410, %v412
        %v414 = vrot.slane %v400, %v413
        %v415 = vcombine.high %v391, 0.0
        %v416 = vcombine.high %v398, 0.0
        %v417 = vcombine.high %v407, 0.0
        %v418 = vcombine.high %v414, 0.0
        %v419 = vcombine.low %v344, %v348
        %v420 = vcombine.high %v344, %v348
        %v422 = vunpack.c.l.s4 1983009808
        %v423 = vunpack.c.0.s8 %v422
        %v424 = vlaneseq
        %v425 = vshrl.u32 %v424, 7
        %v426 = vsub.s32 %v423, %v425
        %v427 = vrot.slane %v419, %v426
        %v429 = vunpack.c.l.s4 1983009808
        %v430 = vunpack.c.0.s8 %v429
        %v431 = vlaneseq
        %v432 = vshrl.u32 %v431, 7
        %v433 = vsub.s32 %v430, %v432
        %v434 = vrot.slane %v420, %v433
        %v435 = vcombine.low %v346, %v350
        %v436 = vcombine.high %v346, %v350
        %v438 = vunpack.c.l.s4 1983009808
        %v439 = vunpack.c.0.s8 %v438
        %v440 = vlaneseq
        %v441 = vshrl.u32 %v440, 7
        %v442 = vsub.s32 %v439, %v441
        %v443 = vrot.slane %v435, %v442
        %v445 = vunpack.c.l.s4 1983009808
        %v446 = vunpack.c.0.s8 %v445
        %v447 = vlaneseq
        %v448 = vshrl.u32 %v447, 7
        %v449 = vsub.s32 %v446, %v448
        %v450 = vrot.slane %v436, %v449
        %v451 = vcombine.low %v427, %v443
        %v452 = vcombine.high %v427, %v443
        %v454 = vunpack.c.l.s4 1934713408
        %v455 = vunpack.c.0.s8 %v454
        %v456 = vlaneseq
        %v457 = vshrl.u32 %v456, 7
        %v458 = vsub.s32 %v455, %v457
        %v459 = vrot.slane %v451, %v458
        %v461 = vunpack.c.l.s4 1934713408
        %v462 = vunpack.c.0.s8 %v461
        %v463 = vlaneseq
        %v464 = vshrl.u32 %v463, 7
        %v465 = vsub.s32 %v462, %v464
        %v466 = vrot.slane %v452, %v465
        %v467 = vcombine.low %v434, %v450
        %v468 = vcombine.high %v434, %v450
        %v470 = vunpack.c.l.s4 1934713408
        %v471 = vunpack.c.0.s8 %v470
        %v472 = vlaneseq
        %v473 = vshrl.u32 %v472, 7
        %v474 = vsub.s32 %v471, %v473
        %v475 = vrot.slane %v467, %v474
        %v477 = vunpack.c.l.s4 1934713408
        %v478 = vunpack.c.0.s8 %v477
        %v479 = vlaneseq
        %v480 = vshrl.u32 %v479, 7
        %v481 = vsub.s32 %v478, %v480
        %v482 = vrot.slane %v468, %v481
        %v483 = vcombine.high %v459, 0.0
        %v484 = vcombine.high %v466, 0.0
        %v485 = vcombine.high %v475, 0.0
        %v486 = vcombine.high %v482, 0.0
        %488 = vrot.lane.b32.xlu0 %v415, 16
        %v489 = vpop.permute.xlu0 %488
        %492 = vrot.lane.b32.xlu0 %v398, 32
        %v493 = vpop.permute.xlu0 %492
        %496 = vrot.lane.b32.xlu0 %v416, 48
        %v497 = vpop.permute.xlu0 %496
        %500 = vrot.lane.b32.xlu0 %v407, 64
        %v501 = vpop.permute.xlu0 %500
        %504 = vrot.lane.b32.xlu0 %v417, 80
        %v505 = vpop.permute.xlu0 %504
        %508 = vrot.lane.b32.xlu0 %v414, 96
        %v509 = vpop.permute.xlu0 %508
        %512 = vrot.lane.b32.xlu0 %v418, 112
        %v513 = vpop.permute.xlu0 %512
        %516 = vrot.lane.b32.xlu0 %v483, 16
        %v517 = vpop.permute.xlu0 %516
        %520 = vrot.lane.b32.xlu0 %v466, 32
        %v521 = vpop.permute.xlu0 %520
        %524 = vrot.lane.b32.xlu0 %v484, 48
        %v525 = vpop.permute.xlu0 %524
        %528 = vrot.lane.b32.xlu0 %v475, 64
        %v529 = vpop.permute.xlu0 %528
        %532 = vrot.lane.b32.xlu0 %v485, 80
        %v533 = vpop.permute.xlu0 %532
        %536 = vrot.lane.b32.xlu0 %v482, 96
        %v537 = vpop.permute.xlu0 %536
        %540 = vrot.lane.b32.xlu0 %v486, 112
        %v541 = vpop.permute.xlu0 %540
        %vm543 = vcmask 130048
        %v544 = vsel %vm543, %v391, %v489
        %vm545 = vcmask 261120
        %v546 = vsel %vm545, %v544, %v493
        %vm547 = vcmask 392192
        %v548 = vsel %vm547, %v546, %v497
        %vm549 = vcmask 523264
        %v550 = vsel %vm549, %v548, %v501
        %vm551 = vcmask 654336
        %v552 = vsel %vm551, %v550, %v505
        %vm553 = vcmask 785408
        %v554 = vsel %vm553, %v552, %v509
        %vm555 = vcmask 916480
        %v556 = vsel %vm555, %v554, %v513
        %v557 = vsel %vm543, %v459, %v517
        %v558 = vsel %vm545, %v557, %v521
        %v559 = vsel %vm547, %v558, %v525
        %v560 = vsel %vm549, %v559, %v529
        %v561 = vsel %vm551, %v560, %v533
        %v562 = vsel %vm553, %v561, %v537
        %v563 = vsel %vm555, %v562, %v541
        %v564 = vld [vmem:[%s301] sm:$0xff]
        %v565 = vld [vmem:[%s301 + $0x8] sm:$0xff]
        %v566 = vld [vmem:[%s301 + $0x10] sm:$0xff]
        %v567 = vld [vmem:[%s301 + $0x18] sm:$0xff]
        %v568 = vld [vmem:[%s301 + $0x20] sm:$0xff]
        %v569 = vld [vmem:[%s301 + $0x28] sm:$0xff]
        %v570 = vld [vmem:[%s301 + $0x30] sm:$0xff]
        %v571 = vld [vmem:[%s301 + $0x38] sm:$0xff]
        %v572 = vcombine.low %v564, %v568
        %v573 = vcombine.high %v564, %v568
        %v575 = vunpack.c.l.s4 1983009808
        %v576 = vunpack.c.0.s8 %v575
        %v577 = vlaneseq
        %v578 = vshrl.u32 %v577, 7
        %v579 = vsub.s32 %v576, %v578
        %v580 = vrot.slane %v572, %v579
        %v582 = vunpack.c.l.s4 1983009808
        %v583 = vunpack.c.0.s8 %v582
        %v584 = vlaneseq
        %v585 = vshrl.u32 %v584, 7
        %v586 = vsub.s32 %v583, %v585
        %v587 = vrot.slane %v573, %v586
        %v588 = vcombine.low %v566, %v570
        %v589 = vcombine.high %v566, %v570
        %v591 = vunpack.c.l.s4 1983009808
        %v592 = vunpack.c.0.s8 %v591
        %v593 = vlaneseq
        %v594 = vshrl.u32 %v593, 7
        %v595 = vsub.s32 %v592, %v594
        %v596 = vrot.slane %v588, %v595
        %v598 = vunpack.c.l.s4 1983009808
        %v599 = vunpack.c.0.s8 %v598
        %v600 = vlaneseq
        %v601 = vshrl.u32 %v600, 7
        %v602 = vsub.s32 %v599, %v601
        %v603 = vrot.slane %v589, %v602
        %v604 = vcombine.low %v580, %v596
        %v605 = vcombine.high %v580, %v596
        %v607 = vunpack.c.l.s4 1934713408
        %v608 = vunpack.c.0.s8 %v607
        %v609 = vlaneseq
        %v610 = vshrl.u32 %v609, 7
        %v611 = vsub.s32 %v608, %v610
        %v612 = vrot.slane %v604, %v611
        %v614 = vunpack.c.l.s4 1934713408
        %v615 = vunpack.c.0.s8 %v614
        %v616 = vlaneseq
        %v617 = vshrl.u32 %v616, 7
        %v618 = vsub.s32 %v615, %v617
        %v619 = vrot.slane %v605, %v618
        %v620 = vcombine.low %v587, %v603
        %v621 = vcombine.high %v587, %v603
        %v623 = vunpack.c.l.s4 1934713408
        %v624 = vunpack.c.0.s8 %v623
        %v625 = vlaneseq
        %v626 = vshrl.u32 %v625, 7
        %v627 = vsub.s32 %v624, %v626
        %v628 = vrot.slane %v620, %v627
        %v630 = vunpack.c.l.s4 1934713408
        %v631 = vunpack.c.0.s8 %v630
        %v632 = vlaneseq
        %v633 = vshrl.u32 %v632, 7
        %v634 = vsub.s32 %v631, %v633
        %v635 = vrot.slane %v621, %v634
        %v636 = vcombine.high %v612, 0.0
        %v637 = vcombine.high %v619, 0.0
        %v638 = vcombine.high %v628, 0.0
        %v639 = vcombine.high %v635, 0.0
        %v640 = vcombine.low %v565, %v569
        %v641 = vcombine.high %v565, %v569
        %v643 = vunpack.c.l.s4 1983009808
        %v644 = vunpack.c.0.s8 %v643
        %v645 = vlaneseq
        %v646 = vshrl.u32 %v645, 7
        %v647 = vsub.s32 %v644, %v646
        %v648 = vrot.slane %v640, %v647
        %v650 = vunpack.c.l.s4 1983009808
        %v651 = vunpack.c.0.s8 %v650
        %v652 = vlaneseq
        %v653 = vshrl.u32 %v652, 7
        %v654 = vsub.s32 %v651, %v653
        %v655 = vrot.slane %v641, %v654
        %v656 = vcombine.low %v567, %v571
        %v657 = vcombine.high %v567, %v571
        %v659 = vunpack.c.l.s4 1983009808
        %v660 = vunpack.c.0.s8 %v659
        %v661 = vlaneseq
        %v662 = vshrl.u32 %v661, 7
        %v663 = vsub.s32 %v660, %v662
        %v664 = vrot.slane %v656, %v663
        %v666 = vunpack.c.l.s4 1983009808
        %v667 = vunpack.c.0.s8 %v666
        %v668 = vlaneseq
        %v669 = vshrl.u32 %v668, 7
        %v670 = vsub.s32 %v667, %v669
        %v671 = vrot.slane %v657, %v670
        %v672 = vcombine.low %v648, %v664
        %v673 = vcombine.high %v648, %v664
        %v675 = vunpack.c.l.s4 1934713408
        %v676 = vunpack.c.0.s8 %v675
        %v677 = vlaneseq
        %v678 = vshrl.u32 %v677, 7
        %v679 = vsub.s32 %v676, %v678
        %v680 = vrot.slane %v672, %v679
        %v682 = vunpack.c.l.s4 1934713408
        %v683 = vunpack.c.0.s8 %v682
        %v684 = vlaneseq
        %v685 = vshrl.u32 %v684, 7
        %v686 = vsub.s32 %v683, %v685
        %v687 = vrot.slane %v673, %v686
        %v688 = vcombine.low %v655, %v671
        %v689 = vcombine.high %v655, %v671
        %v691 = vunpack.c.l.s4 1934713408
        %v692 = vunpack.c.0.s8 %v691
        %v693 = vlaneseq
        %v694 = vshrl.u32 %v693, 7
        %v695 = vsub.s32 %v692, %v694
        %v696 = vrot.slane %v688, %v695
        %v698 = vunpack.c.l.s4 1934713408
        %v699 = vunpack.c.0.s8 %v698
        %v700 = vlaneseq
        %v701 = vshrl.u32 %v700, 7
        %v702 = vsub.s32 %v699, %v701
        %v703 = vrot.slane %v689, %v702
        %v704 = vcombine.high %v680, 0.0
        %v705 = vcombine.high %v687, 0.0
        %v706 = vcombine.high %v696, 0.0
        %v707 = vcombine.high %v703, 0.0
        %709 = vrot.lane.b32.xlu0 %v636, 16
        %v710 = vpop.permute.xlu0 %709
        %713 = vrot.lane.b32.xlu0 %v619, 32
        %v714 = vpop.permute.xlu0 %713
        %717 = vrot.lane.b32.xlu0 %v637, 48
        %v718 = vpop.permute.xlu0 %717
        %721 = vrot.lane.b32.xlu0 %v628, 64
        %v722 = vpop.permute.xlu0 %721
        %725 = vrot.lane.b32.xlu0 %v638, 80
        %v726 = vpop.permute.xlu0 %725
        %729 = vrot.lane.b32.xlu0 %v635, 96
        %v730 = vpop.permute.xlu0 %729
        %733 = vrot.lane.b32.xlu0 %v639, 112
        %v734 = vpop.permute.xlu0 %733
        %737 = vrot.lane.b32.xlu0 %v704, 16
        %v738 = vpop.permute.xlu0 %737
        %741 = vrot.lane.b32.xlu0 %v687, 32
        %v742 = vpop.permute.xlu0 %741
        %745 = vrot.lane.b32.xlu0 %v705, 48
        %v746 = vpop.permute.xlu0 %745
        %749 = vrot.lane.b32.xlu0 %v696, 64
        %v750 = vpop.permute.xlu0 %749
        %753 = vrot.lane.b32.xlu0 %v706, 80
        %v754 = vpop.permute.xlu0 %753
        %757 = vrot.lane.b32.xlu0 %v703, 96
        %v758 = vpop.permute.xlu0 %757
        %761 = vrot.lane.b32.xlu0 %v707, 112
        %v762 = vpop.permute.xlu0 %761
        %v764 = vsel %vm543, %v612, %v710
        %v765 = vsel %vm545, %v764, %v714
        %v766 = vsel %vm547, %v765, %v718
        %v767 = vsel %vm549, %v766, %v722
        %v768 = vsel %vm551, %v767, %v726
        %v769 = vsel %vm553, %v768, %v730
        %v770 = vsel %vm555, %v769, %v734
        %v771 = vsel %vm543, %v680, %v738
        %v772 = vsel %vm545, %v771, %v742
        %v773 = vsel %vm547, %v772, %v746
        %v774 = vsel %vm549, %v773, %v750
        %v775 = vsel %vm551, %v774, %v754
        %v776 = vsel %vm553, %v775, %v758
        %v777 = vsel %vm555, %v776, %v762
        %779 = vset.pattern.permute.xlu0 0
        %780 = vperm.xlu0 %779, %v339
        %v781 = vpop.permute.xlu0 %780
        %vm783 = vcmask 31744
        %v785 = vsel %vm783, %v337, 0
        %vm787 = vcmask 1043456
        %v789 = vsel %vm787, %v556, 0
        %v792 = vsel %vm787, %v563, 0
        %794 = vmatprep.subr.mxu0 %v792
        %795 = vmatpush1.msra.mxu0 %v789
        %796 = vmatprep.subr.mxu0 0.0
        %797 = vmatpush1.msra.mxu0 0.0
        %798 = vmatprep.subr.mxu0 0.0
        %799 = vmatpush1.msra.mxu0 0.0
        %800 = vmatprep.subr.mxu0 0.0
        %801 = vmatpush1.msra.mxu0 0.0
        %802 = vmatprep.subr.mxu0 0.0
        %803 = vmatpush1.msra.mxu0 0.0
        %804 = vmatprep.subr.mxu0 0.0
        %805 = vmatpush1.msra.mxu0 0.0
        %806 = vmatprep.subr.mxu0 0.0
        %807 = vmatpush1.msra.mxu0 0.0
        %808 = vmatprep.subr.mxu0 0.0
        %809 = vmatpush1.msra.mxu0 0.0
        %810 = vmatprep.subr.mxu0 0.0
        %811 = vmatpush1.msra.mxu0 0.0
        %812 = vmatprep.subr.mxu0 0.0
        %813 = vmatpush1.msra.mxu0 0.0
        %814 = vmatprep.subr.mxu0 0.0
        %815 = vmatpush1.msra.mxu0 0.0
        %816 = vmatprep.subr.mxu0 0.0
        %817 = vmatpush1.msra.mxu0 0.0
        %818 = vmatprep.subr.mxu0 0.0
        %819 = vmatpush1.msra.mxu0 0.0
        %820 = vmatprep.subr.mxu0 0.0
        %821 = vmatpush1.msra.mxu0 0.0
        %822 = vmatprep.subr.mxu0 0.0
        %823 = vmatpush1.msra.mxu0 0.0
        %824 = vmatprep.subr.mxu0 0.0
        %825 = vmatpush1.msra.mxu0 0.0
        %826 = vmatprep.subr.mxu0 0.0
        %827 = vmatpush1.msra.mxu0 0.0
        %828 = vmatprep.subr.mxu0 0.0
        %829 = vmatpush1.msra.mxu0 0.0
        %830 = vmatprep.subr.mxu0 0.0
        %831 = vmatpush1.msra.mxu0 0.0
        %832 = vmatprep.subr.mxu0 0.0
        %833 = vmatpush1.msra.mxu0 0.0
        %834 = vmatprep.subr.mxu0 0.0
        %835 = vmatpush1.msra.mxu0 0.0
        %836 = vmatprep.subr.mxu0 0.0
        %837 = vmatpush1.msra.mxu0 0.0
        %838 = vmatprep.subr.mxu0 0.0
        %839 = vmatpush1.msra.mxu0 0.0
        %840 = vmatprep.subr.mxu0 0.0
        %841 = vmatpush1.msra.mxu0 0.0
        %842 = vmatprep.subr.mxu0 0.0
        %843 = vmatpush1.msra.mxu0 0.0
        %844 = vmatprep.subr.mxu0 0.0
        %845 = vmatpush1.msra.mxu0 0.0
        %846 = vmatprep.subr.mxu0 0.0
        %847 = vmatpush1.msra.mxu0 0.0
        %848 = vmatprep.subr.mxu0 0.0
        %849 = vmatpush1.msra.mxu0 0.0
        %850 = vmatprep.subr.mxu0 0.0
        %851 = vmatpush1.msra.mxu0 0.0
        %852 = vmatprep.subr.mxu0 0.0
        %853 = vmatpush1.msra.mxu0 0.0
        %854 = vmatprep.subr.mxu0 0.0
        %855 = vmatpush1.msra.mxu0 0.0
        %856 = vmatprep.subr.mxu0 0.0
        %857 = vmatpush1.msra.mxu0 0.0
        %858 = vmatprep.mubr.f32.mxu0 0.0
        %859 = vmatmul.mubr.f32.gmra.mrb[0].mxu0 %v785
        %v860 = vpop.f32.mrb[0].mxu0
        %v861 = vadd.f32 %v781, %v860
        %v862 = vpop.f32.mrb[0].mxu0
        %v863 = vadd.f32 %v781, %v862
        %864 = vdwg.mxu0
        %866 = vset.pattern.permute.xlu0 0
        %867 = vperm.xlu0 %866, %v340
        %v868 = vpop.permute.xlu0 %867
        %v871 = vsel %vm783, %v338, 0
        %v874 = vsel %vm787, %v770, 0
        %v877 = vsel %vm787, %v777, 0
        %879 = vmatprep.subr.mxu0 %v877
        %880 = vmatpush1.msra.mxu0 %v874
        %881 = vmatprep.subr.mxu0 0.0
        %882 = vmatpush1.msra.mxu0 0.0
        %883 = vmatprep.subr.mxu0 0.0
        %884 = vmatpush1.msra.mxu0 0.0
        %885 = vmatprep.subr.mxu0 0.0
        %886 = vmatpush1.msra.mxu0 0.0
        %887 = vmatprep.subr.mxu0 0.0
        %888 = vmatpush1.msra.mxu0 0.0
        %889 = vmatprep.subr.mxu0 0.0
        %890 = vmatpush1.msra.mxu0 0.0
        %891 = vmatprep.subr.mxu0 0.0
        %892 = vmatpush1.msra.mxu0 0.0
        %893 = vmatprep.subr.mxu0 0.0
        %894 = vmatpush1.msra.mxu0 0.0
        %895 = vmatprep.subr.mxu0 0.0
        %896 = vmatpush1.msra.mxu0 0.0
        %897 = vmatprep.subr.mxu0 0.0
        %898 = vmatpush1.msra.mxu0 0.0
        %899 = vmatprep.subr.mxu0 0.0
        %900 = vmatpush1.msra.mxu0 0.0
        %901 = vmatprep.subr.mxu0 0.0
        %902 = vmatpush1.msra.mxu0 0.0
        %903 = vmatprep.subr.mxu0 0.0
        %904 = vmatpush1.msra.mxu0 0.0
        %905 = vmatprep.subr.mxu0 0.0
        %906 = vmatpush1.msra.mxu0 0.0
        %907 = vmatprep.subr.mxu0 0.0
        %908 = vmatpush1.msra.mxu0 0.0
        %909 = vmatprep.subr.mxu0 0.0
        %910 = vmatpush1.msra.mxu0 0.0
        %911 = vmatprep.subr.mxu0 0.0
        %912 = vmatpush1.msra.mxu0 0.0
        %913 = vmatprep.subr.mxu0 0.0
        %914 = vmatpush1.msra.mxu0 0.0
        %915 = vmatprep.subr.mxu0 0.0
        %916 = vmatpush1.msra.mxu0 0.0
        %917 = vmatprep.subr.mxu0 0.0
        %918 = vmatpush1.msra.mxu0 0.0
        %919 = vmatprep.subr.mxu0 0.0
        %920 = vmatpush1.msra.mxu0 0.0
        %921 = vmatprep.subr.mxu0 0.0
        %922 = vmatpush1.msra.mxu0 0.0
        %923 = vmatprep.subr.mxu0 0.0
        %924 = vmatpush1.msra.mxu0 0.0
        %925 = vmatprep.subr.mxu0 0.0
        %926 = vmatpush1.msra.mxu0 0.0
        %927 = vmatprep.subr.mxu0 0.0
        %928 = vmatpush1.msra.mxu0 0.0
        %929 = vmatprep.subr.mxu0 0.0
        %930 = vmatpush1.msra.mxu0 0.0
        %931 = vmatprep.subr.mxu0 0.0
        %932 = vmatpush1.msra.mxu0 0.0
        %933 = vmatprep.subr.mxu0 0.0
        %934 = vmatpush1.msra.mxu0 0.0
        %935 = vmatprep.subr.mxu0 0.0
        %936 = vmatpush1.msra.mxu0 0.0
        %937 = vmatprep.subr.mxu0 0.0
        %938 = vmatpush1.msra.mxu0 0.0
        %939 = vmatprep.subr.mxu0 0.0
        %940 = vmatpush1.msra.mxu0 0.0
        %941 = vmatprep.subr.mxu0 0.0
        %942 = vmatpush1.msra.mxu0 0.0
        %943 = vmatprep.mubr.f32.mxu0 0.0
        %944 = vmatmul.mubr.f32.gmra.mrb[0].mxu0 %v871
        %v945 = vpop.f32.mrb[0].mxu0
        %v946 = vadd.f32 %v868, %v945
        %v947 = vpop.f32.mrb[0].mxu0
        %v948 = vadd.f32 %v868, %v947
        %949 = vdwg.mxu0
        %951 = vrot.lane.b32.xlu0 %v861, 112
        %v952 = vpop.permute.xlu0 %951
        %954 = vrot.lane.b32.xlu0 %v861, 96
        %v955 = vpop.permute.xlu0 %954
        %957 = vrot.lane.b32.xlu0 %v861, 80
        %v958 = vpop.permute.xlu0 %957
        %960 = vrot.lane.b32.xlu0 %v861, 64
        %v961 = vpop.permute.xlu0 %960
        %963 = vrot.lane.b32.xlu0 %v861, 48
        %v964 = vpop.permute.xlu0 %963
        %966 = vrot.lane.b32.xlu0 %v861, 32
        %v967 = vpop.permute.xlu0 %966
        %969 = vrot.lane.b32.xlu0 %v861, 16
        %v970 = vpop.permute.xlu0 %969
        %973 = vrot.lane.b32.xlu0 %v863, 112
        %v974 = vpop.permute.xlu0 %973
        %976 = vrot.lane.b32.xlu0 %v863, 96
        %v977 = vpop.permute.xlu0 %976
        %979 = vrot.lane.b32.xlu0 %v863, 80
        %v980 = vpop.permute.xlu0 %979
        %982 = vrot.lane.b32.xlu0 %v863, 64
        %v983 = vpop.permute.xlu0 %982
        %985 = vrot.lane.b32.xlu0 %v863, 48
        %v986 = vpop.permute.xlu0 %985
        %988 = vrot.lane.b32.xlu0 %v863, 32
        %v989 = vpop.permute.xlu0 %988
        %991 = vrot.lane.b32.xlu0 %v863, 16
        %v992 = vpop.permute.xlu0 %991
        %v994 = vcombine.low %v861, %v955
        %v995 = vcombine.high %v861, %v955
        %v997 = vunpack.c.l.s4 1983009808
        %v998 = vunpack.c.0.s8 %v997
        %v999 = vlaneseq
        %v1000 = vshrl.u32 %v999, 7
        %v1001 = vsub.s32 %v998, %v1000
        %v1002 = vrot.slane %v994, %v1001
        %v1004 = vunpack.c.l.s4 1983009808
        %v1005 = vunpack.c.0.s8 %v1004
        %v1006 = vlaneseq
        %v1007 = vshrl.u32 %v1006, 7
        %v1008 = vsub.s32 %v1005, %v1007
        %v1009 = vrot.slane %v995, %v1008
        %v1010 = vcombine.low %v952, %v958
        %v1011 = vcombine.high %v952, %v958
        %v1013 = vunpack.c.l.s4 1983009808
        %v1014 = vunpack.c.0.s8 %v1013
        %v1015 = vlaneseq
        %v1016 = vshrl.u32 %v1015, 7
        %v1017 = vsub.s32 %v1014, %v1016
        %v1018 = vrot.slane %v1010, %v1017
        %v1020 = vunpack.c.l.s4 1983009808
        %v1021 = vunpack.c.0.s8 %v1020
        %v1022 = vlaneseq
        %v1023 = vshrl.u32 %v1022, 7
        %v1024 = vsub.s32 %v1021, %v1023
        %v1025 = vrot.slane %v1011, %v1024
        %v1026 = vcombine.low %v961, %v967
        %v1027 = vcombine.high %v961, %v967
        %v1029 = vunpack.c.l.s4 1983009808
        %v1030 = vunpack.c.0.s8 %v1029
        %v1031 = vlaneseq
        %v1032 = vshrl.u32 %v1031, 7
        %v1033 = vsub.s32 %v1030, %v1032
        %v1034 = vrot.slane %v1026, %v1033
        %v1036 = vunpack.c.l.s4 1983009808
        %v1037 = vunpack.c.0.s8 %v1036
        %v1038 = vlaneseq
        %v1039 = vshrl.u32 %v1038, 7
        %v1040 = vsub.s32 %v1037, %v1039
        %v1041 = vrot.slane %v1027, %v1040
        %v1042 = vcombine.low %v964, %v970
        %v1043 = vcombine.high %v964, %v970
        %v1045 = vunpack.c.l.s4 1983009808
        %v1046 = vunpack.c.0.s8 %v1045
        %v1047 = vlaneseq
        %v1048 = vshrl.u32 %v1047, 7
        %v1049 = vsub.s32 %v1046, %v1048
        %v1050 = vrot.slane %v1042, %v1049
        %v1052 = vunpack.c.l.s4 1983009808
        %v1053 = vunpack.c.0.s8 %v1052
        %v1054 = vlaneseq
        %v1055 = vshrl.u32 %v1054, 7
        %v1056 = vsub.s32 %v1053, %v1055
        %v1057 = vrot.slane %v1043, %v1056
        %v1058 = vcombine.low %v1002, %v1018
        %v1059 = vcombine.high %v1002, %v1018
        %v1061 = vunpack.c.l.s4 1934713408
        %v1062 = vunpack.c.0.s8 %v1061
        %v1063 = vlaneseq
        %v1064 = vshrl.u32 %v1063, 7
        %v1065 = vsub.s32 %v1062, %v1064
        %v1066 = vrot.slane %v1058, %v1065
        %v1068 = vunpack.c.l.s4 1934713408
        %v1069 = vunpack.c.0.s8 %v1068
        %v1070 = vlaneseq
        %v1071 = vshrl.u32 %v1070, 7
        %v1072 = vsub.s32 %v1069, %v1071
        %v1073 = vrot.slane %v1059, %v1072
        %v1074 = vcombine.low %v1009, %v1025
        %v1075 = vcombine.high %v1009, %v1025
        %v1077 = vunpack.c.l.s4 1934713408
        %v1078 = vunpack.c.0.s8 %v1077
        %v1079 = vlaneseq
        %v1080 = vshrl.u32 %v1079, 7
        %v1081 = vsub.s32 %v1078, %v1080
        %v1082 = vrot.slane %v1074, %v1081
        %v1084 = vunpack.c.l.s4 1934713408
        %v1085 = vunpack.c.0.s8 %v1084
        %v1086 = vlaneseq
        %v1087 = vshrl.u32 %v1086, 7
        %v1088 = vsub.s32 %v1085, %v1087
        %v1089 = vrot.slane %v1075, %v1088
        %v1090 = vcombine.low %v1034, %v1050
        %v1091 = vcombine.high %v1034, %v1050
        %v1093 = vunpack.c.l.s4 1934713408
        %v1094 = vunpack.c.0.s8 %v1093
        %v1095 = vlaneseq
        %v1096 = vshrl.u32 %v1095, 7
        %v1097 = vsub.s32 %v1094, %v1096
        %v1098 = vrot.slane %v1090, %v1097
        %v1100 = vunpack.c.l.s4 1934713408
        %v1101 = vunpack.c.0.s8 %v1100
        %v1102 = vlaneseq
        %v1103 = vshrl.u32 %v1102, 7
        %v1104 = vsub.s32 %v1101, %v1103
        %v1105 = vrot.slane %v1091, %v1104
        %v1106 = vcombine.low %v1041, %v1057
        %v1107 = vcombine.high %v1041, %v1057
        %v1109 = vunpack.c.l.s4 1934713408
        %v1110 = vunpack.c.0.s8 %v1109
        %v1111 = vlaneseq
        %v1112 = vshrl.u32 %v1111, 7
        %v1113 = vsub.s32 %v1110, %v1112
        %v1114 = vrot.slane %v1106, %v1113
        %v1116 = vunpack.c.l.s4 1934713408
        %v1117 = vunpack.c.0.s8 %v1116
        %v1118 = vlaneseq
        %v1119 = vshrl.u32 %v1118, 7
        %v1120 = vsub.s32 %v1117, %v1119
        %v1121 = vrot.slane %v1107, %v1120
        %v1122 = vcombine.low %v1066, %v1098
        %v1123 = vcombine.high %v1066, %v1098
        %v1124 = vcombine.low %v1073, %v1105
        %v1125 = vcombine.high %v1073, %v1105
        %v1126 = vcombine.low %v1082, %v1114
        %v1127 = vcombine.high %v1082, %v1114
        %v1128 = vcombine.low %v1089, %v1121
        %v1129 = vcombine.high %v1089, %v1121
        %v1130 = vcombine.low %v863, %v977
        %v1131 = vcombine.high %v863, %v977
        %v1133 = vunpack.c.l.s4 1983009808
        %v1134 = vunpack.c.0.s8 %v1133
        %v1135 = vlaneseq
        %v1136 = vshrl.u32 %v1135, 7
        %v1137 = vsub.s32 %v1134, %v1136
        %v1138 = vrot.slane %v1130, %v1137
        %v1140 = vunpack.c.l.s4 1983009808
        %v1141 = vunpack.c.0.s8 %v1140
        %v1142 = vlaneseq
        %v1143 = vshrl.u32 %v1142, 7
        %v1144 = vsub.s32 %v1141, %v1143
        %v1145 = vrot.slane %v1131, %v1144
        %v1146 = vcombine.low %v974, %v980
        %v1147 = vcombine.high %v974, %v980
        %v1149 = vunpack.c.l.s4 1983009808
        %v1150 = vunpack.c.0.s8 %v1149
        %v1151 = vlaneseq
        %v1152 = vshrl.u32 %v1151, 7
        %v1153 = vsub.s32 %v1150, %v1152
        %v1154 = vrot.slane %v1146, %v1153
        %v1156 = vunpack.c.l.s4 1983009808
        %v1157 = vunpack.c.0.s8 %v1156
        %v1158 = vlaneseq
        %v1159 = vshrl.u32 %v1158, 7
        %v1160 = vsub.s32 %v1157, %v1159
        %v1161 = vrot.slane %v1147, %v1160
        %v1162 = vcombine.low %v983, %v989
        %v1163 = vcombine.high %v983, %v989
        %v1165 = vunpack.c.l.s4 1983009808
        %v1166 = vunpack.c.0.s8 %v1165
        %v1167 = vlaneseq
        %v1168 = vshrl.u32 %v1167, 7
        %v1169 = vsub.s32 %v1166, %v1168
        %v1170 = vrot.slane %v1162, %v1169
        %v1172 = vunpack.c.l.s4 1983009808
        %v1173 = vunpack.c.0.s8 %v1172
        %v1174 = vlaneseq
        %v1175 = vshrl.u32 %v1174, 7
        %v1176 = vsub.s32 %v1173, %v1175
        %v1177 = vrot.slane %v1163, %v1176
        %v1178 = vcombine.low %v986, %v992
        %v1179 = vcombine.high %v986, %v992
        %v1181 = vunpack.c.l.s4 1983009808
        %v1182 = vunpack.c.0.s8 %v1181
        %v1183 = vlaneseq
        %v1184 = vshrl.u32 %v1183, 7
        %v1185 = vsub.s32 %v1182, %v1184
        %v1186 = vrot.slane %v1178, %v1185
        %v1188 = vunpack.c.l.s4 1983009808
        %v1189 = vunpack.c.0.s8 %v1188
        %v1190 = vlaneseq
        %v1191 = vshrl.u32 %v1190, 7
        %v1192 = vsub.s32 %v1189, %v1191
        %v1193 = vrot.slane %v1179, %v1192
        %v1194 = vcombine.low %v1138, %v1154
        %v1195 = vcombine.high %v1138, %v1154
        %v1197 = vunpack.c.l.s4 1934713408
        %v1198 = vunpack.c.0.s8 %v1197
        %v1199 = vlaneseq
        %v1200 = vshrl.u32 %v1199, 7
        %v1201 = vsub.s32 %v1198, %v1200
        %v1202 = vrot.slane %v1194, %v1201
        %v1204 = vunpack.c.l.s4 1934713408
        %v1205 = vunpack.c.0.s8 %v1204
        %v1206 = vlaneseq
        %v1207 = vshrl.u32 %v1206, 7
        %v1208 = vsub.s32 %v1205, %v1207
        %v1209 = vrot.slane %v1195, %v1208
        %v1210 = vcombine.low %v1145, %v1161
        %v1211 = vcombine.high %v1145, %v1161
        %v1213 = vunpack.c.l.s4 1934713408
        %v1214 = vunpack.c.0.s8 %v1213
        %v1215 = vlaneseq
        %v1216 = vshrl.u32 %v1215, 7
        %v1217 = vsub.s32 %v1214, %v1216
        %v1218 = vrot.slane %v1210, %v1217
        %v1220 = vunpack.c.l.s4 1934713408
        %v1221 = vunpack.c.0.s8 %v1220
        %v1222 = vlaneseq
        %v1223 = vshrl.u32 %v1222, 7
        %v1224 = vsub.s32 %v1221, %v1223
        %v1225 = vrot.slane %v1211, %v1224
        %v1226 = vcombine.low %v1170, %v1186
        %v1227 = vcombine.high %v1170, %v1186
        %v1229 = vunpack.c.l.s4 1934713408
        %v1230 = vunpack.c.0.s8 %v1229
        %v1231 = vlaneseq
        %v1232 = vshrl.u32 %v1231, 7
        %v1233 = vsub.s32 %v1230, %v1232
        %v1234 = vrot.slane %v1226, %v1233
        %v1236 = vunpack.c.l.s4 1934713408
        %v1237 = vunpack.c.0.s8 %v1236
        %v1238 = vlaneseq
        %v1239 = vshrl.u32 %v1238, 7
        %v1240 = vsub.s32 %v1237, %v1239
        %v1241 = vrot.slane %v1227, %v1240
        %v1242 = vcombine.low %v1177, %v1193
        %v1243 = vcombine.high %v1177, %v1193
        %v1245 = vunpack.c.l.s4 1934713408
        %v1246 = vunpack.c.0.s8 %v1245
        %v1247 = vlaneseq
        %v1248 = vshrl.u32 %v1247, 7
        %v1249 = vsub.s32 %v1246, %v1248
        %v1250 = vrot.slane %v1242, %v1249
        %v1252 = vunpack.c.l.s4 1934713408
        %v1253 = vunpack.c.0.s8 %v1252
        %v1254 = vlaneseq
        %v1255 = vshrl.u32 %v1254, 7
        %v1256 = vsub.s32 %v1253, %v1255
        %v1257 = vrot.slane %v1243, %v1256
        %v1258 = vcombine.low %v1202, %v1234
        %v1259 = vcombine.high %v1202, %v1234
        %v1260 = vcombine.low %v1209, %v1241
        %v1261 = vcombine.high %v1209, %v1241
        %v1262 = vcombine.low %v1218, %v1250
        %v1263 = vcombine.high %v1218, %v1250
        %v1264 = vcombine.low %v1225, %v1257
        %v1265 = vcombine.high %v1225, %v1257
        %1267 = vrot.lane.b32.xlu0 %v946, 112
        %v1268 = vpop.permute.xlu0 %1267
        %1270 = vrot.lane.b32.xlu0 %v946, 96
        %v1271 = vpop.permute.xlu0 %1270
        %1273 = vrot.lane.b32.xlu0 %v946, 80
        %v1274 = vpop.permute.xlu0 %1273
        %1276 = vrot.lane.b32.xlu0 %v946, 64
        %v1277 = vpop.permute.xlu0 %1276
        %1279 = vrot.lane.b32.xlu0 %v946, 48
        %v1280 = vpop.permute.xlu0 %1279
        %1282 = vrot.lane.b32.xlu0 %v946, 32
        %v1283 = vpop.permute.xlu0 %1282
        %1285 = vrot.lane.b32.xlu0 %v946, 16
        %v1286 = vpop.permute.xlu0 %1285
        %1289 = vrot.lane.b32.xlu0 %v948, 112
        %v1290 = vpop.permute.xlu0 %1289
        %1292 = vrot.lane.b32.xlu0 %v948, 96
        %v1293 = vpop.permute.xlu0 %1292
        %1295 = vrot.lane.b32.xlu0 %v948, 80
        %v1296 = vpop.permute.xlu0 %1295
        %1298 = vrot.lane.b32.xlu0 %v948, 64
        %v1299 = vpop.permute.xlu0 %1298
        %1301 = vrot.lane.b32.xlu0 %v948, 48
        %v1302 = vpop.permute.xlu0 %1301
        %1304 = vrot.lane.b32.xlu0 %v948, 32
        %v1305 = vpop.permute.xlu0 %1304
        %1307 = vrot.lane.b32.xlu0 %v948, 16
        %v1308 = vpop.permute.xlu0 %1307
        %v1310 = vcombine.low %v946, %v1271
        %v1311 = vcombine.high %v946, %v1271
        %v1313 = vunpack.c.l.s4 1983009808
        %v1314 = vunpack.c.0.s8 %v1313
        %v1315 = vlaneseq
        %v1316 = vshrl.u32 %v1315, 7
        %v1317 = vsub.s32 %v1314, %v1316
        %v1318 = vrot.slane %v1310, %v1317
        %v1320 = vunpack.c.l.s4 1983009808
        %v1321 = vunpack.c.0.s8 %v1320
        %v1322 = vlaneseq
        %v1323 = vshrl.u32 %v1322, 7
        %v1324 = vsub.s32 %v1321, %v1323
        %v1325 = vrot.slane %v1311, %v1324
        %v1326 = vcombine.low %v1268, %v1274
        %v1327 = vcombine.high %v1268, %v1274
        %v1329 = vunpack.c.l.s4 1983009808
        %v1330 = vunpack.c.0.s8 %v1329
        %v1331 = vlaneseq
        %v1332 = vshrl.u32 %v1331, 7
        %v1333 = vsub.s32 %v1330, %v1332
        %v1334 = vrot.slane %v1326, %v1333
        %v1336 = vunpack.c.l.s4 1983009808
        %v1337 = vunpack.c.0.s8 %v1336
        %v1338 = vlaneseq
        %v1339 = vshrl.u32 %v1338, 7
        %v1340 = vsub.s32 %v1337, %v1339
        %v1341 = vrot.slane %v1327, %v1340
        %v1342 = vcombine.low %v1277, %v1283
        %v1343 = vcombine.high %v1277, %v1283
        %v1345 = vunpack.c.l.s4 1983009808
        %v1346 = vunpack.c.0.s8 %v1345
        %v1347 = vlaneseq
        %v1348 = vshrl.u32 %v1347, 7
        %v1349 = vsub.s32 %v1346, %v1348
        %v1350 = vrot.slane %v1342, %v1349
        %v1352 = vunpack.c.l.s4 1983009808
        %v1353 = vunpack.c.0.s8 %v1352
        %v1354 = vlaneseq
        %v1355 = vshrl.u32 %v1354, 7
        %v1356 = vsub.s32 %v1353, %v1355
        %v1357 = vrot.slane %v1343, %v1356
        %v1358 = vcombine.low %v1280, %v1286
        %v1359 = vcombine.high %v1280, %v1286
        %v1361 = vunpack.c.l.s4 1983009808
        %v1362 = vunpack.c.0.s8 %v1361
        %v1363 = vlaneseq
        %v1364 = vshrl.u32 %v1363, 7
        %v1365 = vsub.s32 %v1362, %v1364
        %v1366 = vrot.slane %v1358, %v1365
        %v1368 = vunpack.c.l.s4 1983009808
        %v1369 = vunpack.c.0.s8 %v1368
        %v1370 = vlaneseq
        %v1371 = vshrl.u32 %v1370, 7
        %v1372 = vsub.s32 %v1369, %v1371
        %v1373 = vrot.slane %v1359, %v1372
        %v1374 = vcombine.low %v1318, %v1334
        %v1375 = vcombine.high %v1318, %v1334
        %v1377 = vunpack.c.l.s4 1934713408
        %v1378 = vunpack.c.0.s8 %v1377
        %v1379 = vlaneseq
        %v1380 = vshrl.u32 %v1379, 7
        %v1381 = vsub.s32 %v1378, %v1380
        %v1382 = vrot.slane %v1374, %v1381
        %v1384 = vunpack.c.l.s4 1934713408
        %v1385 = vunpack.c.0.s8 %v1384
        %v1386 = vlaneseq
        %v1387 = vshrl.u32 %v1386, 7
        %v1388 = vsub.s32 %v1385, %v1387
        %v1389 = vrot.slane %v1375, %v1388
        %v1390 = vcombine.low %v1325, %v1341
        %v1391 = vcombine.high %v1325, %v1341
        %v1393 = vunpack.c.l.s4 1934713408
        %v1394 = vunpack.c.0.s8 %v1393
        %v1395 = vlaneseq
        %v1396 = vshrl.u32 %v1395, 7
        %v1397 = vsub.s32 %v1394, %v1396
        %v1398 = vrot.slane %v1390, %v1397
        %v1400 = vunpack.c.l.s4 1934713408
        %v1401 = vunpack.c.0.s8 %v1400
        %v1402 = vlaneseq
        %v1403 = vshrl.u32 %v1402, 7
        %v1404 = vsub.s32 %v1401, %v1403
        %v1405 = vrot.slane %v1391, %v1404
        %v1406 = vcombine.low %v1350, %v1366
        %v1407 = vcombine.high %v1350, %v1366
        %v1409 = vunpack.c.l.s4 1934713408
        %v1410 = vunpack.c.0.s8 %v1409
        %v1411 = vlaneseq
        %v1412 = vshrl.u32 %v1411, 7
        %v1413 = vsub.s32 %v1410, %v1412
        %v1414 = vrot.slane %v1406, %v1413
        %v1416 = vunpack.c.l.s4 1934713408
        %v1417 = vunpack.c.0.s8 %v1416
        %v1418 = vlaneseq
        %v1419 = vshrl.u32 %v1418, 7
        %v1420 = vsub.s32 %v1417, %v1419
        %v1421 = vrot.slane %v1407, %v1420
        %v1422 = vcombine.low %v1357, %v1373
        %v1423 = vcombine.high %v1357, %v1373
        %v1425 = vunpack.c.l.s4 1934713408
        %v1426 = vunpack.c.0.s8 %v1425
        %v1427 = vlaneseq
        %v1428 = vshrl.u32 %v1427, 7
        %v1429 = vsub.s32 %v1426, %v1428
        %v1430 = vrot.slane %v1422, %v1429
        %v1432 = vunpack.c.l.s4 1934713408
        %v1433 = vunpack.c.0.s8 %v1432
        %v1434 = vlaneseq
        %v1435 = vshrl.u32 %v1434, 7
        %v1436 = vsub.s32 %v1433, %v1435
        %v1437 = vrot.slane %v1423, %v1436
        %v1438 = vcombine.low %v1382, %v1414
        %v1439 = vcombine.high %v1382, %v1414
        %v1440 = vcombine.low %v1389, %v1421
        %v1441 = vcombine.high %v1389, %v1421
        %v1442 = vcombine.low %v1398, %v1430
        %v1443 = vcombine.high %v1398, %v1430
        %v1444 = vcombine.low %v1405, %v1437
        %v1445 = vcombine.high %v1405, %v1437
        %v1446 = vcombine.low %v948, %v1293
        %v1447 = vcombine.high %v948, %v1293
        %v1449 = vunpack.c.l.s4 1983009808
        %v1450 = vunpack.c.0.s8 %v1449
        %v1451 = vlaneseq
        %v1452 = vshrl.u32 %v1451, 7
        %v1453 = vsub.s32 %v1450, %v1452
        %v1454 = vrot.slane %v1446, %v1453
        %v1456 = vunpack.c.l.s4 1983009808
        %v1457 = vunpack.c.0.s8 %v1456
        %v1458 = vlaneseq
        %v1459 = vshrl.u32 %v1458, 7
        %v1460 = vsub.s32 %v1457, %v1459
        %v1461 = vrot.slane %v1447, %v1460
        %v1462 = vcombine.low %v1290, %v1296
        %v1463 = vcombine.high %v1290, %v1296
        %v1465 = vunpack.c.l.s4 1983009808
        %v1466 = vunpack.c.0.s8 %v1465
        %v1467 = vlaneseq
        %v1468 = vshrl.u32 %v1467, 7
        %v1469 = vsub.s32 %v1466, %v1468
        %v1470 = vrot.slane %v1462, %v1469
        %v1472 = vunpack.c.l.s4 1983009808
        %v1473 = vunpack.c.0.s8 %v1472
        %v1474 = vlaneseq
        %v1475 = vshrl.u32 %v1474, 7
        %v1476 = vsub.s32 %v1473, %v1475
        %v1477 = vrot.slane %v1463, %v1476
        %v1478 = vcombine.low %v1299, %v1305
        %v1479 = vcombine.high %v1299, %v1305
        %v1481 = vunpack.c.l.s4 1983009808
        %v1482 = vunpack.c.0.s8 %v1481
        %v1483 = vlaneseq
        %v1484 = vshrl.u32 %v1483, 7
        %v1485 = vsub.s32 %v1482, %v1484
        %v1486 = vrot.slane %v1478, %v1485
        %v1488 = vunpack.c.l.s4 1983009808
        %v1489 = vunpack.c.0.s8 %v1488
        %v1490 = vlaneseq
        %v1491 = vshrl.u32 %v1490, 7
        %v1492 = vsub.s32 %v1489, %v1491
        %v1493 = vrot.slane %v1479, %v1492
        %v1494 = vcombine.low %v1302, %v1308
        %v1495 = vcombine.high %v1302, %v1308
        %v1497 = vunpack.c.l.s4 1983009808
        %v1498 = vunpack.c.0.s8 %v1497
        %v1499 = vlaneseq
        %v1500 = vshrl.u32 %v1499, 7
        %v1501 = vsub.s32 %v1498, %v1500
        %v1502 = vrot.slane %v1494, %v1501
        %v1504 = vunpack.c.l.s4 1983009808
        %v1505 = vunpack.c.0.s8 %v1504
        %v1506 = vlaneseq
        %v1507 = vshrl.u32 %v1506, 7
        %v1508 = vsub.s32 %v1505, %v1507
        %v1509 = vrot.slane %v1495, %v1508
        %v1510 = vcombine.low %v1454, %v1470
        %v1511 = vcombine.high %v1454, %v1470
        %v1513 = vunpack.c.l.s4 1934713408
        %v1514 = vunpack.c.0.s8 %v1513
        %v1515 = vlaneseq
        %v1516 = vshrl.u32 %v1515, 7
        %v1517 = vsub.s32 %v1514, %v1516
        %v1518 = vrot.slane %v1510, %v1517
        %v1520 = vunpack.c.l.s4 1934713408
        %v1521 = vunpack.c.0.s8 %v1520
        %v1522 = vlaneseq
        %v1523 = vshrl.u32 %v1522, 7
        %v1524 = vsub.s32 %v1521, %v1523
        %v1525 = vrot.slane %v1511, %v1524
        %v1526 = vcombine.low %v1461, %v1477
        %v1527 = vcombine.high %v1461, %v1477
        %v1529 = vunpack.c.l.s4 1934713408
        %v1530 = vunpack.c.0.s8 %v1529
        %v1531 = vlaneseq
        %v1532 = vshrl.u32 %v1531, 7
        %v1533 = vsub.s32 %v1530, %v1532
        %v1534 = vrot.slane %v1526, %v1533
        %v1536 = vunpack.c.l.s4 1934713408
        %v1537 = vunpack.c.0.s8 %v1536
        %v1538 = vlaneseq
        %v1539 = vshrl.u32 %v1538, 7
        %v1540 = vsub.s32 %v1537, %v1539
        %v1541 = vrot.slane %v1527, %v1540
        %v1542 = vcombine.low %v1486, %v1502
        %v1543 = vcombine.high %v1486, %v1502
        %v1545 = vunpack.c.l.s4 1934713408
        %v1546 = vunpack.c.0.s8 %v1545
        %v1547 = vlaneseq
        %v1548 = vshrl.u32 %v1547, 7
        %v1549 = vsub.s32 %v1546, %v1548
        %v1550 = vrot.slane %v1542, %v1549
        %v1552 = vunpack.c.l.s4 1934713408
        %v1553 = vunpack.c.0.s8 %v1552
        %v1554 = vlaneseq
        %v1555 = vshrl.u32 %v1554, 7
        %v1556 = vsub.s32 %v1553, %v1555
        %v1557 = vrot.slane %v1543, %v1556
        %v1558 = vcombine.low %v1493, %v1509
        %v1559 = vcombine.high %v1493, %v1509
        %v1561 = vunpack.c.l.s4 1934713408
        %v1562 = vunpack.c.0.s8 %v1561
        %v1563 = vlaneseq
        %v1564 = vshrl.u32 %v1563, 7
        %v1565 = vsub.s32 %v1562, %v1564
        %v1566 = vrot.slane %v1558, %v1565
        %v1568 = vunpack.c.l.s4 1934713408
        %v1569 = vunpack.c.0.s8 %v1568
        %v1570 = vlaneseq
        %v1571 = vshrl.u32 %v1570, 7
        %v1572 = vsub.s32 %v1569, %v1571
        %v1573 = vrot.slane %v1559, %v1572
        %v1574 = vcombine.low %v1518, %v1550
        %v1575 = vcombine.high %v1518, %v1550
        %v1576 = vcombine.low %v1525, %v1557
        %v1577 = vcombine.high %v1525, %v1557
        %v1578 = vcombine.low %v1534, %v1566
        %v1579 = vcombine.high %v1534, %v1566
        %v1580 = vcombine.low %v1541, %v1573
        %v1581 = vcombine.high %v1541, %v1573
        %v1582 = vmul.f32 %v1438, %v341
        %v1583 = vmul.f32 %v1574, %v342
        %v1584 = vmul.f32 %v1439, %v341
        %v1585 = vmul.f32 %v1575, %v342
        %v1586 = vmul.f32 %v1440, %v341
        %v1587 = vmul.f32 %v1576, %v342
        %v1588 = vmul.f32 %v1441, %v341
        %v1589 = vmul.f32 %v1577, %v342
        %v1590 = vmul.f32 %v1442, %v341
        %v1591 = vmul.f32 %v1578, %v342
        %v1592 = vmul.f32 %v1443, %v341
        %v1593 = vmul.f32 %v1579, %v342
        %v1594 = vmul.f32 %v1444, %v341
        %v1595 = vmul.f32 %v1580, %v342
        %v1596 = vmul.f32 %v1445, %v341
        %v1597 = vmul.f32 %v1581, %v342
        %v1599 = vsel %vm543, %v1582, 0
        %v1602 = vsel %vm543, %v1583, 0
        %1604 = vmatprep.subr.mxu0 0.0
        %1605 = vmatpush1.msra.mxu0 %v1122
        %1606 = vmatprep.subr.mxu0 0.0
        %1607 = vmatpush1.msra.mxu0 %v1258
        %1608 = vmatprep.subr.mxu0 0.0
        %1609 = vmatpush1.msra.mxu0 0.0
        %1610 = vmatprep.subr.mxu0 0.0
        %1611 = vmatpush1.msra.mxu0 0.0
        %1612 = vmatprep.subr.mxu0 0.0
        %1613 = vmatpush1.msra.mxu0 0.0
        %1614 = vmatprep.subr.mxu0 0.0
        %1615 = vmatpush1.msra.mxu0 0.0
        %1616 = vmatprep.subr.mxu0 0.0
        %1617 = vmatpush1.msra.mxu0 0.0
        %1618 = vmatprep.subr.mxu0 0.0
        %1619 = vmatpush1.msra.mxu0 0.0
        %1620 = vmatprep.subr.mxu0 0.0
        %1621 = vmatpush1.msra.mxu0 0.0
        %1622 = vmatprep.subr.mxu0 0.0
        %1623 = vmatpush1.msra.mxu0 0.0
        %1624 = vmatprep.subr.mxu0 0.0
        %1625 = vmatpush1.msra.mxu0 0.0
        %1626 = vmatprep.subr.mxu0 0.0
        %1627 = vmatpush1.msra.mxu0 0.0
        %1628 = vmatprep.subr.mxu0 0.0
        %1629 = vmatpush1.msra.mxu0 0.0
        %1630 = vmatprep.subr.mxu0 0.0
        %1631 = vmatpush1.msra.mxu0 0.0
        %1632 = vmatprep.subr.mxu0 0.0
        %1633 = vmatpush1.msra.mxu0 0.0
        %1634 = vmatprep.subr.mxu0 0.0
        %1635 = vmatpush1.msra.mxu0 0.0
        %1636 = vmatprep.subr.mxu0 0.0
        %1637 = vmatpush1.msra.mxu0 0.0
        %1638 = vmatprep.subr.mxu0 0.0
        %1639 = vmatpush1.msra.mxu0 0.0
        %1640 = vmatprep.subr.mxu0 0.0
        %1641 = vmatpush1.msra.mxu0 0.0
        %1642 = vmatprep.subr.mxu0 0.0
        %1643 = vmatpush1.msra.mxu0 0.0
        %1644 = vmatprep.subr.mxu0 0.0
        %1645 = vmatpush1.msra.mxu0 0.0
        %1646 = vmatprep.subr.mxu0 0.0
        %1647 = vmatpush1.msra.mxu0 0.0
        %1648 = vmatprep.subr.mxu0 0.0
        %1649 = vmatpush1.msra.mxu0 0.0
        %1650 = vmatprep.subr.mxu0 0.0
        %1651 = vmatpush1.msra.mxu0 0.0
        %1652 = vmatprep.subr.mxu0 0.0
        %1653 = vmatpush1.msra.mxu0 0.0
        %1654 = vmatprep.subr.mxu0 0.0
        %1655 = vmatpush1.msra.mxu0 0.0
        %1656 = vmatprep.subr.mxu0 0.0
        %1657 = vmatpush1.msra.mxu0 0.0
        %1658 = vmatprep.subr.mxu0 0.0
        %1659 = vmatpush1.msra.mxu0 0.0
        %1660 = vmatprep.subr.mxu0 0.0
        %1661 = vmatpush1.msra.mxu0 0.0
        %1662 = vmatprep.subr.mxu0 0.0
        %1663 = vmatpush1.msra.mxu0 0.0
        %1664 = vmatprep.subr.mxu0 0.0
        %1665 = vmatpush1.msra.mxu0 0.0
        %1666 = vmatprep.subr.mxu0 0.0
        %1667 = vmatpush1.msra.mxu0 0.0
        %1668 = vmatprep.mubr.f32.mxu0 0.0
        %1669 = vmatmul.mubr.f32.gmra.mrb[0].mxu0 %v1599
        %v1670 = vpop.f32.mrb[0].mxu0
        %v1671 = vadd.f32 0.0, %v1670
        %v1672 = vpop.f32.mrb[0].mxu0
        %1673 = vmatprep.mubr.f32.mxu0 0.0
        %1674 = vmatmul.mubr.f32.gmra.mrb[0].mxu0 %v1602
        %v1675 = vpop.f32.mrb[0].mxu0
        %v1676 = vadd.f32 0.0, %v1675
        %v1677 = vpop.f32.mrb[0].mxu0
        %1678 = vdwg.mxu0
        %v1680 = vsel %vm543, %v1584, 0
        %v1683 = vsel %vm543, %v1585, 0
        %1685 = vmatprep.subr.mxu0 0.0
        %1686 = vmatpush1.msra.mxu0 %v1123
        %1687 = vmatprep.subr.mxu0 0.0
        %1688 = vmatpush1.msra.mxu0 %v1259
        %1689 = vmatprep.subr.mxu0 0.0
        %1690 = vmatpush1.msra.mxu0 0.0
        %1691 = vmatprep.subr.mxu0 0.0
        %1692 = vmatpush1.msra.mxu0 0.0
        %1693 = vmatprep.subr.mxu0 0.0
        %1694 = vmatpush1.msra.mxu0 0.0
        %1695 = vmatprep.subr.mxu0 0.0
        %1696 = vmatpush1.msra.mxu0 0.0
        %1697 = vmatprep.subr.mxu0 0.0
        %1698 = vmatpush1.msra.mxu0 0.0
        %1699 = vmatprep.subr.mxu0 0.0
        %1700 = vmatpush1.msra.mxu0 0.0
        %1701 = vmatprep.subr.mxu0 0.0
        %1702 = vmatpush1.msra.mxu0 0.0
        %1703 = vmatprep.subr.mxu0 0.0
        %1704 = vmatpush1.msra.mxu0 0.0
        %1705 = vmatprep.subr.mxu0 0.0
        %1706 = vmatpush1.msra.mxu0 0.0
        %1707 = vmatprep.subr.mxu0 0.0
        %1708 = vmatpush1.msra.mxu0 0.0
        %1709 = vmatprep.subr.mxu0 0.0
        %1710 = vmatpush1.msra.mxu0 0.0
        %1711 = vmatprep.subr.mxu0 0.0
        %1712 = vmatpush1.msra.mxu0 0.0
        %1713 = vmatprep.subr.mxu0 0.0
        %1714 = vmatpush1.msra.mxu0 0.0
        %1715 = vmatprep.subr.mxu0 0.0
        %1716 = vmatpush1.msra.mxu0 0.0
        %1717 = vmatprep.subr.mxu0 0.0
        %1718 = vmatpush1.msra.mxu0 0.0
        %1719 = vmatprep.subr.mxu0 0.0
        %1720 = vmatpush1.msra.mxu0 0.0
        %1721 = vmatprep.subr.mxu0 0.0
        %1722 = vmatpush1.msra.mxu0 0.0
        %1723 = vmatprep.subr.mxu0 0.0
        %1724 = vmatpush1.msra.mxu0 0.0
        %1725 = vmatprep.subr.mxu0 0.0
        %1726 = vmatpush1.msra.mxu0 0.0
        %1727 = vmatprep.subr.mxu0 0.0
        %1728 = vmatpush1.msra.mxu0 0.0
        %1729 = vmatprep.subr.mxu0 0.0
        %1730 = vmatpush1.msra.mxu0 0.0
        %1731 = vmatprep.subr.mxu0 0.0
        %1732 = vmatpush1.msra.mxu0 0.0
        %1733 = vmatprep.subr.mxu0 0.0
        %1734 = vmatpush1.msra.mxu0 0.0
        %1735 = vmatprep.subr.mxu0 0.0
        %1736 = vmatpush1.msra.mxu0 0.0
        %1737 = vmatprep.subr.mxu0 0.0
        %1738 = vmatpush1.msra.mxu0 0.0
        %1739 = vmatprep.subr.mxu0 0.0
        %1740 = vmatpush1.msra.mxu0 0.0
        %1741 = vmatprep.subr.mxu0 0.0
        %1742 = vmatpush1.msra.mxu0 0.0
        %1743 = vmatprep.subr.mxu0 0.0
        %1744 = vmatpush1.msra.mxu0 0.0
        %1745 = vmatprep.subr.mxu0 0.0
        %1746 = vmatpush1.msra.mxu0 0.0
        %1747 = vmatprep.subr.mxu0 0.0
        %1748 = vmatpush1.msra.mxu0 0.0
        %1749 = vmatprep.mubr.f32.mxu0 0.0
        %1750 = vmatmul.mubr.f32.gmra.mrb[0].mxu0 %v1680
        %v1751 = vpop.f32.mrb[0].mxu0
        %v1752 = vadd.f32 0.0, %v1751
        %v1753 = vpop.f32.mrb[0].mxu0
        %1754 = vmatprep.mubr.f32.mxu0 0.0
        %1755 = vmatmul.mubr.f32.gmra.mrb[0].mxu0 %v1683
        %v1756 = vpop.f32.mrb[0].mxu0
        %v1757 = vadd.f32 0.0, %v1756
        %v1758 = vpop.f32.mrb[0].mxu0
        %1759 = vdwg.mxu0
        %v1761 = vsel %vm543, %v1586, 0
        %v1764 = vsel %vm543, %v1587, 0
        %1766 = vmatprep.subr.mxu0 0.0
        %1767 = vmatpush1.msra.mxu0 %v1124
        %1768 = vmatprep.subr.mxu0 0.0
        %1769 = vmatpush1.msra.mxu0 %v1260
        %1770 = vmatprep.subr.mxu0 0.0
        %1771 = vmatpush1.msra.mxu0 0.0
        %1772 = vmatprep.subr.mxu0 0.0
        %1773 = vmatpush1.msra.mxu0 0.0
        %1774 = vmatprep.subr.mxu0 0.0
        %1775 = vmatpush1.msra.mxu0 0.0
        %1776 = vmatprep.subr.mxu0 0.0
        %1777 = vmatpush1.msra.mxu0 0.0
        %1778 = vmatprep.subr.mxu0 0.0
        %1779 = vmatpush1.msra.mxu0 0.0
        %1780 = vmatprep.subr.mxu0 0.0
        %1781 = vmatpush1.msra.mxu0 0.0
        %1782 = vmatprep.subr.mxu0 0.0
        %1783 = vmatpush1.msra.mxu0 0.0
        %1784 = vmatprep.subr.mxu0 0.0
        %1785 = vmatpush1.msra.mxu0 0.0
        %1786 = vmatprep.subr.mxu0 0.0
        %1787 = vmatpush1.msra.mxu0 0.0
        %1788 = vmatprep.subr.mxu0 0.0
        %1789 = vmatpush1.msra.mxu0 0.0
        %1790 = vmatprep.subr.mxu0 0.0
        %1791 = vmatpush1.msra.mxu0 0.0
        %1792 = vmatprep.subr.mxu0 0.0
        %1793 = vmatpush1.msra.mxu0 0.0
        %1794 = vmatprep.subr.mxu0 0.0
        %1795 = vmatpush1.msra.mxu0 0.0
        %1796 = vmatprep.subr.mxu0 0.0
        %1797 = vmatpush1.msra.mxu0 0.0
        %1798 = vmatprep.subr.mxu0 0.0
        %1799 = vmatpush1.msra.mxu0 0.0
        %1800 = vmatprep.subr.mxu0 0.0
        %1801 = vmatpush1.msra.mxu0 0.0
        %1802 = vmatprep.subr.mxu0 0.0
        %1803 = vmatpush1.msra.mxu0 0.0
        %1804 = vmatprep.subr.mxu0 0.0
        %1805 = vmatpush1.msra.mxu0 0.0
        %1806 = vmatprep.subr.mxu0 0.0
        %1807 = vmatpush1.msra.mxu0 0.0
        %1808 = vmatprep.subr.mxu0 0.0
        %1809 = vmatpush1.msra.mxu0 0.0
        %1810 = vmatprep.subr.mxu0 0.0
        %1811 = vmatpush1.msra.mxu0 0.0
        %1812 = vmatprep.subr.mxu0 0.0
        %1813 = vmatpush1.msra.mxu0 0.0
        %1814 = vmatprep.subr.mxu0 0.0
        %1815 = vmatpush1.msra.mxu0 0.0
        %1816 = vmatprep.subr.mxu0 0.0
        %1817 = vmatpush1.msra.mxu0 0.0
        %1818 = vmatprep.subr.mxu0 0.0
        %1819 = vmatpush1.msra.mxu0 0.0
        %1820 = vmatprep.subr.mxu0 0.0
        %1821 = vmatpush1.msra.mxu0 0.0
        %1822 = vmatprep.subr.mxu0 0.0
        %1823 = vmatpush1.msra.mxu0 0.0
        %1824 = vmatprep.subr.mxu0 0.0
        %1825 = vmatpush1.msra.mxu0 0.0
        %1826 = vmatprep.subr.mxu0 0.0
        %1827 = vmatpush1.msra.mxu0 0.0
        %1828 = vmatprep.subr.mxu0 0.0
        %1829 = vmatpush1.msra.mxu0 0.0
        %1830 = vmatprep.mubr.f32.mxu0 0.0
        %1831 = vmatmul.mubr.f32.gmra.mrb[0].mxu0 %v1761
        %v1832 = vpop.f32.mrb[0].mxu0
        %v1833 = vadd.f32 0.0, %v1832
        %v1834 = vpop.f32.mrb[0].mxu0
        %1835 = vmatprep.mubr.f32.mxu0 0.0
        %1836 = vmatmul.mubr.f32.gmra.mrb[0].mxu0 %v1764
        %v1837 = vpop.f32.mrb[0].mxu0
        %v1838 = vadd.f32 0.0, %v1837
        %v1839 = vpop.f32.mrb[0].mxu0
        %1840 = vdwg.mxu0
        %v1842 = vsel %vm543, %v1588, 0
        %v1845 = vsel %vm543, %v1589, 0
        %1847 = vmatprep.subr.mxu0 0.0
        %1848 = vmatpush1.msra.mxu0 %v1125
        %1849 = vmatprep.subr.mxu0 0.0
        %1850 = vmatpush1.msra.mxu0 %v1261
        %1851 = vmatprep.subr.mxu0 0.0
        %1852 = vmatpush1.msra.mxu0 0.0
        %1853 = vmatprep.subr.mxu0 0.0
        %1854 = vmatpush1.msra.mxu0 0.0
        %1855 = vmatprep.subr.mxu0 0.0
        %1856 = vmatpush1.msra.mxu0 0.0
        %1857 = vmatprep.subr.mxu0 0.0
        %1858 = vmatpush1.msra.mxu0 0.0
        %1859 = vmatprep.subr.mxu0 0.0
        %1860 = vmatpush1.msra.mxu0 0.0
        %1861 = vmatprep.subr.mxu0 0.0
        %1862 = vmatpush1.msra.mxu0 0.0
        %1863 = vmatprep.subr.mxu0 0.0
        %1864 = vmatpush1.msra.mxu0 0.0
        %1865 = vmatprep.subr.mxu0 0.0
        %1866 = vmatpush1.msra.mxu0 0.0
        %1867 = vmatprep.subr.mxu0 0.0
        %1868 = vmatpush1.msra.mxu0 0.0
        %1869 = vmatprep.subr.mxu0 0.0
        %1870 = vmatpush1.msra.mxu0 0.0
        %1871 = vmatprep.subr.mxu0 0.0
        %1872 = vmatpush1.msra.mxu0 0.0
        %1873 = vmatprep.subr.mxu0 0.0
        %1874 = vmatpush1.msra.mxu0 0.0
        %1875 = vmatprep.subr.mxu0 0.0
        %1876 = vmatpush1.msra.mxu0 0.0
        %1877 = vmatprep.subr.mxu0 0.0
        %1878 = vmatpush1.msra.mxu0 0.0
        %1879 = vmatprep.subr.mxu0 0.0
        %1880 = vmatpush1.msra.mxu0 0.0
        %1881 = vmatprep.subr.mxu0 0.0
        %1882 = vmatpush1.msra.mxu0 0.0
        %1883 = vmatprep.subr.mxu0 0.0
        %1884 = vmatpush1.msra.mxu0 0.0
        %1885 = vmatprep.subr.mxu0 0.0
        %1886 = vmatpush1.msra.mxu0 0.0
        %1887 = vmatprep.subr.mxu0 0.0
        %1888 = vmatpush1.msra.mxu0 0.0
        %1889 = vmatprep.subr.mxu0 0.0
        %1890 = vmatpush1.msra.mxu0 0.0
        %1891 = vmatprep.subr.mxu0 0.0
        %1892 = vmatpush1.msra.mxu0 0.0
        %1893 = vmatprep.subr.mxu0 0.0
        %1894 = vmatpush1.msra.mxu0 0.0
        %1895 = vmatprep.subr.mxu0 0.0
        %1896 = vmatpush1.msra.mxu0 0.0
        %1897 = vmatprep.subr.mxu0 0.0
        %1898 = vmatpush1.msra.mxu0 0.0
        %1899 = vmatprep.subr.mxu0 0.0
        %1900 = vmatpush1.msra.mxu0 0.0
        %1901 = vmatprep.subr.mxu0 0.0
        %1902 = vmatpush1.msra.mxu0 0.0
        %1903 = vmatprep.subr.mxu0 0.0
        %1904 = vmatpush1.msra.mxu0 0.0
        %1905 = vmatprep.subr.mxu0 0.0
        %1906 = vmatpush1.msra.mxu0 0.0
        %1907 = vmatprep.subr.mxu0 0.0
        %1908 = vmatpush1.msra.mxu0 0.0
        %1909 = vmatprep.subr.mxu0 0.0
        %1910 = vmatpush1.msra.mxu0 0.0
        %1911 = vmatprep.mubr.f32.mxu0 0.0
        %1912 = vmatmul.mubr.f32.gmra.mrb[0].mxu0 %v1842
        %v1913 = vpop.f32.mrb[0].mxu0
        %v1914 = vadd.f32 0.0, %v1913
        %v1915 = vpop.f32.mrb[0].mxu0
        %1916 = vmatprep.mubr.f32.mxu0 0.0
        %1917 = vmatmul.mubr.f32.gmra.mrb[0].mxu0 %v1845
        %v1918 = vpop.f32.mrb[0].mxu0
        %v1919 = vadd.f32 0.0, %v1918
        %v1920 = vpop.f32.mrb[0].mxu0
        %1921 = vdwg.mxu0
        %v1923 = vsel %vm543, %v1590, 0
        %v1926 = vsel %vm543, %v1591, 0
        %1928 = vmatprep.subr.mxu0 0.0
        %1929 = vmatpush1.msra.mxu0 %v1126
        %1930 = vmatprep.subr.mxu0 0.0
        %1931 = vmatpush1.msra.mxu0 %v1262
        %1932 = vmatprep.subr.mxu0 0.0
        %1933 = vmatpush1.msra.mxu0 0.0
        %1934 = vmatprep.subr.mxu0 0.0
        %1935 = vmatpush1.msra.mxu0 0.0
        %1936 = vmatprep.subr.mxu0 0.0
        %1937 = vmatpush1.msra.mxu0 0.0
        %1938 = vmatprep.subr.mxu0 0.0
        %1939 = vmatpush1.msra.mxu0 0.0
        %1940 = vmatprep.subr.mxu0 0.0
        %1941 = vmatpush1.msra.mxu0 0.0
        %1942 = vmatprep.subr.mxu0 0.0
        %1943 = vmatpush1.msra.mxu0 0.0
        %1944 = vmatprep.subr.mxu0 0.0
        %1945 = vmatpush1.msra.mxu0 0.0
        %1946 = vmatprep.subr.mxu0 0.0
        %1947 = vmatpush1.msra.mxu0 0.0
        %1948 = vmatprep.subr.mxu0 0.0
        %1949 = vmatpush1.msra.mxu0 0.0
        %1950 = vmatprep.subr.mxu0 0.0
        %1951 = vmatpush1.msra.mxu0 0.0
        %1952 = vmatprep.subr.mxu0 0.0
        %1953 = vmatpush1.msra.mxu0 0.0
        %1954 = vmatprep.subr.mxu0 0.0
        %1955 = vmatpush1.msra.mxu0 0.0
        %1956 = vmatprep.subr.mxu0 0.0
        %1957 = vmatpush1.msra.mxu0 0.0
        %1958 = vmatprep.subr.mxu0 0.0
        %1959 = vmatpush1.msra.mxu0 0.0
        %1960 = vmatprep.subr.mxu0 0.0
        %1961 = vmatpush1.msra.mxu0 0.0
        %1962 = vmatprep.subr.mxu0 0.0
        %1963 = vmatpush1.msra.mxu0 0.0
        %1964 = vmatprep.subr.mxu0 0.0
        %1965 = vmatpush1.msra.mxu0 0.0
        %1966 = vmatprep.subr.mxu0 0.0
        %1967 = vmatpush1.msra.mxu0 0.0
        %1968 = vmatprep.subr.mxu0 0.0
        %1969 = vmatpush1.msra.mxu0 0.0
        %1970 = vmatprep.subr.mxu0 0.0
        %1971 = vmatpush1.msra.mxu0 0.0
        %1972 = vmatprep.subr.mxu0 0.0
        %1973 = vmatpush1.msra.mxu0 0.0
        %1974 = vmatprep.subr.mxu0 0.0
        %1975 = vmatpush1.msra.mxu0 0.0
        %1976 = vmatprep.subr.mxu0 0.0
        %1977 = vmatpush1.msra.mxu0 0.0
        %1978 = vmatprep.subr.mxu0 0.0
        %1979 = vmatpush1.msra.mxu0 0.0
        %1980 = vmatprep.subr.mxu0 0.0
        %1981 = vmatpush1.msra.mxu0 0.0
        %1982 = vmatprep.subr.mxu0 0.0
        %1983 = vmatpush1.msra.mxu0 0.0
        %1984 = vmatprep.subr.mxu0 0.0
        %1985 = vmatpush1.msra.mxu0 0.0
        %1986 = vmatprep.subr.mxu0 0.0
        %1987 = vmatpush1.msra.mxu0 0.0
        %1988 = vmatprep.subr.mxu0 0.0
        %1989 = vmatpush1.msra.mxu0 0.0
        %1990 = vmatprep.subr.mxu0 0.0
        %1991 = vmatpush1.msra.mxu0 0.0
        %1992 = vmatprep.mubr.f32.mxu0 0.0
        %1993 = vmatmul.mubr.f32.gmra.mrb[0].mxu0 %v1923
        %v1994 = vpop.f32.mrb[0].mxu0
        %v1995 = vadd.f32 0.0, %v1994
        %v1996 = vpop.f32.mrb[0].mxu0
        %1997 = vmatprep.mubr.f32.mxu0 0.0
        %1998 = vmatmul.mubr.f32.gmra.mrb[0].mxu0 %v1926
        %v1999 = vpop.f32.mrb[0].mxu0
        %v2000 = vadd.f32 0.0, %v1999
        %v2001 = vpop.f32.mrb[0].mxu0
        %2002 = vdwg.mxu0
        %v2004 = vsel %vm543, %v1592, 0
        %v2007 = vsel %vm543, %v1593, 0
        %2009 = vmatprep.subr.mxu0 0.0
        %2010 = vmatpush1.msra.mxu0 %v1127
        %2011 = vmatprep.subr.mxu0 0.0
        %2012 = vmatpush1.msra.mxu0 %v1263
        %2013 = vmatprep.subr.mxu0 0.0
        %2014 = vmatpush1.msra.mxu0 0.0
        %2015 = vmatprep.subr.mxu0 0.0
        %2016 = vmatpush1.msra.mxu0 0.0
        %2017 = vmatprep.subr.mxu0 0.0
        %2018 = vmatpush1.msra.mxu0 0.0
        %2019 = vmatprep.subr.mxu0 0.0
        %2020 = vmatpush1.msra.mxu0 0.0
        %2021 = vmatprep.subr.mxu0 0.0
        %2022 = vmatpush1.msra.mxu0 0.0
        %2023 = vmatprep.subr.mxu0 0.0
        %2024 = vmatpush1.msra.mxu0 0.0
        %2025 = vmatprep.subr.mxu0 0.0
        %2026 = vmatpush1.msra.mxu0 0.0
        %2027 = vmatprep.subr.mxu0 0.0
        %2028 = vmatpush1.msra.mxu0 0.0
        %2029 = vmatprep.subr.mxu0 0.0
        %2030 = vmatpush1.msra.mxu0 0.0
        %2031 = vmatprep.subr.mxu0 0.0
        %2032 = vmatpush1.msra.mxu0 0.0
        %2033 = vmatprep.subr.mxu0 0.0
        %2034 = vmatpush1.msra.mxu0 0.0
        %2035 = vmatprep.subr.mxu0 0.0
        %2036 = vmatpush1.msra.mxu0 0.0
        %2037 = vmatprep.subr.mxu0 0.0
        %2038 = vmatpush1.msra.mxu0 0.0
        %2039 = vmatprep.subr.mxu0 0.0
        %2040 = vmatpush1.msra.mxu0 0.0
        %2041 = vmatprep.subr.mxu0 0.0
        %2042 = vmatpush1.msra.mxu0 0.0
        %2043 = vmatprep.subr.mxu0 0.0
        %2044 = vmatpush1.msra.mxu0 0.0
        %2045 = vmatprep.subr.mxu0 0.0
        %2046 = vmatpush1.msra.mxu0 0.0
        %2047 = vmatprep.subr.mxu0 0.0
        %2048 = vmatpush1.msra.mxu0 0.0
        %2049 = vmatprep.subr.mxu0 0.0
        %2050 = vmatpush1.msra.mxu0 0.0
        %2051 = vmatprep.subr.mxu0 0.0
        %2052 = vmatpush1.msra.mxu0 0.0
        %2053 = vmatprep.subr.mxu0 0.0
        %2054 = vmatpush1.msra.mxu0 0.0
        %2055 = vmatprep.subr.mxu0 0.0
        %2056 = vmatpush1.msra.mxu0 0.0
        %2057 = vmatprep.subr.mxu0 0.0
        %2058 = vmatpush1.msra.mxu0 0.0
        %2059 = vmatprep.subr.mxu0 0.0
        %2060 = vmatpush1.msra.mxu0 0.0
        %2061 = vmatprep.subr.mxu0 0.0
        %2062 = vmatpush1.msra.mxu0 0.0
        %2063 = vmatprep.subr.mxu0 0.0
        %2064 = vmatpush1.msra.mxu0 0.0
        %2065 = vmatprep.subr.mxu0 0.0
        %2066 = vmatpush1.msra.mxu0 0.0
        %2067 = vmatprep.subr.mxu0 0.0
        %2068 = vmatpush1.msra.mxu0 0.0
        %2069 = vmatprep.subr.mxu0 0.0
        %2070 = vmatpush1.msra.mxu0 0.0
        %2071 = vmatprep.subr.mxu0 0.0
        %2072 = vmatpush1.msra.mxu0 0.0
        %2073 = vmatprep.mubr.f32.mxu0 0.0
        %2074 = vmatmul.mubr.f32.gmra.mrb[0].mxu0 %v2004
        %v2075 = vpop.f32.mrb[0].mxu0
        %v2076 = vadd.f32 0.0, %v2075
        %v2077 = vpop.f32.mrb[0].mxu0
        %2078 = vmatprep.mubr.f32.mxu0 0.0
        %2079 = vmatmul.mubr.f32.gmra.mrb[0].mxu0 %v2007
        %v2080 = vpop.f32.mrb[0].mxu0
        %v2081 = vadd.f32 0.0, %v2080
        %v2082 = vpop.f32.mrb[0].mxu0
        %2083 = vdwg.mxu0
        %v2085 = vsel %vm543, %v1594, 0
        %v2088 = vsel %vm543, %v1595, 0
        %2090 = vmatprep.subr.mxu0 0.0
        %2091 = vmatpush1.msra.mxu0 %v1128
        %2092 = vmatprep.subr.mxu0 0.0
        %2093 = vmatpush1.msra.mxu0 %v1264
        %2094 = vmatprep.subr.mxu0 0.0
        %2095 = vmatpush1.msra.mxu0 0.0
        %2096 = vmatprep.subr.mxu0 0.0
        %2097 = vmatpush1.msra.mxu0 0.0
        %2098 = vmatprep.subr.mxu0 0.0
        %2099 = vmatpush1.msra.mxu0 0.0
        %2100 = vmatprep.subr.mxu0 0.0
        %2101 = vmatpush1.msra.mxu0 0.0
        %2102 = vmatprep.subr.mxu0 0.0
        %2103 = vmatpush1.msra.mxu0 0.0
        %2104 = vmatprep.subr.mxu0 0.0
        %2105 = vmatpush1.msra.mxu0 0.0
        %2106 = vmatprep.subr.mxu0 0.0
        %2107 = vmatpush1.msra.mxu0 0.0
        %2108 = vmatprep.subr.mxu0 0.0
        %2109 = vmatpush1.msra.mxu0 0.0
        %2110 = vmatprep.subr.mxu0 0.0
        %2111 = vmatpush1.msra.mxu0 0.0
        %2112 = vmatprep.subr.mxu0 0.0
        %2113 = vmatpush1.msra.mxu0 0.0
        %2114 = vmatprep.subr.mxu0 0.0
        %2115 = vmatpush1.msra.mxu0 0.0
        %2116 = vmatprep.subr.mxu0 0.0
        %2117 = vmatpush1.msra.mxu0 0.0
        %2118 = vmatprep.subr.mxu0 0.0
        %2119 = vmatpush1.msra.mxu0 0.0
        %2120 = vmatprep.subr.mxu0 0.0
        %2121 = vmatpush1.msra.mxu0 0.0
        %2122 = vmatprep.subr.mxu0 0.0
        %2123 = vmatpush1.msra.mxu0 0.0
        %2124 = vmatprep.subr.mxu0 0.0
        %2125 = vmatpush1.msra.mxu0 0.0
        %2126 = vmatprep.subr.mxu0 0.0
        %2127 = vmatpush1.msra.mxu0 0.0
        %2128 = vmatprep.subr.mxu0 0.0
        %2129 = vmatpush1.msra.mxu0 0.0
        %2130 = vmatprep.subr.mxu0 0.0
        %2131 = vmatpush1.msra.mxu0 0.0
        %2132 = vmatprep.subr.mxu0 0.0
        %2133 = vmatpush1.msra.mxu0 0.0
        %2134 = vmatprep.subr.mxu0 0.0
        %2135 = vmatpush1.msra.mxu0 0.0
        %2136 = vmatprep.subr.mxu0 0.0
        %2137 = vmatpush1.msra.mxu0 0.0
        %2138 = vmatprep.subr.mxu0 0.0
        %2139 = vmatpush1.msra.mxu0 0.0
        %2140 = vmatprep.subr.mxu0 0.0
        %2141 = vmatpush1.msra.mxu0 0.0
        %2142 = vmatprep.subr.mxu0 0.0
        %2143 = vmatpush1.msra.mxu0 0.0
        %2144 = vmatprep.subr.mxu0 0.0
        %2145 = vmatpush1.msra.mxu0 0.0
        %2146 = vmatprep.subr.mxu0 0.0
        %2147 = vmatpush1.msra.mxu0 0.0
        %2148 = vmatprep.subr.mxu0 0.0
        %2149 = vmatpush1.msra.mxu0 0.0
        %2150 = vmatprep.subr.mxu0 0.0
        %2151 = vmatpush1.msra.mxu0 0.0
        %2152 = vmatprep.subr.mxu0 0.0
        %2153 = vmatpush1.msra.mxu0 0.0
        %2154 = vmatprep.mubr.f32.mxu0 0.0
        %2155 = vmatmul.mubr.f32.gmra.mrb[0].mxu0 %v2085
        %v2156 = vpop.f32.mrb[0].mxu0
        %v2157 = vadd.f32 0.0, %v2156
        %v2158 = vpop.f32.mrb[0].mxu0
        %2159 = vmatprep.mubr.f32.mxu0 0.0
        %2160 = vmatmul.mubr.f32.gmra.mrb[0].mxu0 %v2088
        %v2161 = vpop.f32.mrb[0].mxu0
        %v2162 = vadd.f32 0.0, %v2161
        %v2163 = vpop.f32.mrb[0].mxu0
        %2164 = vdwg.mxu0
        %v2166 = vsel %vm543, %v1596, 0
        %v2169 = vsel %vm543, %v1597, 0
        %2171 = vmatprep.subr.mxu0 0.0
        %2172 = vmatpush1.msra.mxu0 %v1129
        %2173 = vmatprep.subr.mxu0 0.0
        %2174 = vmatpush1.msra.mxu0 %v1265
        %2175 = vmatprep.subr.mxu0 0.0
        %2176 = vmatpush1.msra.mxu0 0.0
        %2177 = vmatprep.subr.mxu0 0.0
        %2178 = vmatpush1.msra.mxu0 0.0
        %2179 = vmatprep.subr.mxu0 0.0
        %2180 = vmatpush1.msra.mxu0 0.0
        %2181 = vmatprep.subr.mxu0 0.0
        %2182 = vmatpush1.msra.mxu0 0.0
        %2183 = vmatprep.subr.mxu0 0.0
        %2184 = vmatpush1.msra.mxu0 0.0
        %2185 = vmatprep.subr.mxu0 0.0
        %2186 = vmatpush1.msra.mxu0 0.0
        %2187 = vmatprep.subr.mxu0 0.0
        %2188 = vmatpush1.msra.mxu0 0.0
        %2189 = vmatprep.subr.mxu0 0.0
        %2190 = vmatpush1.msra.mxu0 0.0
        %2191 = vmatprep.subr.mxu0 0.0
        %2192 = vmatpush1.msra.mxu0 0.0
        %2193 = vmatprep.subr.mxu0 0.0
        %2194 = vmatpush1.msra.mxu0 0.0
        %2195 = vmatprep.subr.mxu0 0.0
        %2196 = vmatpush1.msra.mxu0 0.0
        %2197 = vmatprep.subr.mxu0 0.0
        %2198 = vmatpush1.msra.mxu0 0.0
        %2199 = vmatprep.subr.mxu0 0.0
        %2200 = vmatpush1.msra.mxu0 0.0
        %2201 = vmatprep.subr.mxu0 0.0
        %2202 = vmatpush1.msra.mxu0 0.0
        %2203 = vmatprep.subr.mxu0 0.0
        %2204 = vmatpush1.msra.mxu0 0.0
        %2205 = vmatprep.subr.mxu0 0.0
        %2206 = vmatpush1.msra.mxu0 0.0
        %2207 = vmatprep.subr.mxu0 0.0
        %2208 = vmatpush1.msra.mxu0 0.0
        %2209 = vmatprep.subr.mxu0 0.0
        %2210 = vmatpush1.msra.mxu0 0.0
        %2211 = vmatprep.subr.mxu0 0.0
        %2212 = vmatpush1.msra.mxu0 0.0
        %2213 = vmatprep.subr.mxu0 0.0
        %2214 = vmatpush1.msra.mxu0 0.0
        %2215 = vmatprep.subr.mxu0 0.0
        %2216 = vmatpush1.msra.mxu0 0.0
        %2217 = vmatprep.subr.mxu0 0.0
        %2218 = vmatpush1.msra.mxu0 0.0
        %2219 = vmatprep.subr.mxu0 0.0
        %2220 = vmatpush1.msra.mxu0 0.0
        %2221 = vmatprep.subr.mxu0 0.0
        %2222 = vmatpush1.msra.mxu0 0.0
        %2223 = vmatprep.subr.mxu0 0.0
        %2224 = vmatpush1.msra.mxu0 0.0
        %2225 = vmatprep.subr.mxu0 0.0
        %2226 = vmatpush1.msra.mxu0 0.0
        %2227 = vmatprep.subr.mxu0 0.0
        %2228 = vmatpush1.msra.mxu0 0.0
        %2229 = vmatprep.subr.mxu0 0.0
        %2230 = vmatpush1.msra.mxu0 0.0
        %2231 = vmatprep.subr.mxu0 0.0
        %2232 = vmatpush1.msra.mxu0 0.0
        %2233 = vmatprep.subr.mxu0 0.0
        %2234 = vmatpush1.msra.mxu0 0.0
        %2235 = vmatprep.mubr.f32.mxu0 0.0
        %2236 = vmatmul.mubr.f32.gmra.mrb[0].mxu0 %v2166
        %v2237 = vpop.f32.mrb[0].mxu0
        %v2238 = vadd.f32 0.0, %v2237
        %v2239 = vpop.f32.mrb[0].mxu0
        %2240 = vmatprep.mubr.f32.mxu0 0.0
        %2241 = vmatmul.mubr.f32.gmra.mrb[0].mxu0 %v2169
        %v2242 = vpop.f32.mrb[0].mxu0
        %v2243 = vadd.f32 0.0, %v2242
        %v2244 = vpop.f32.mrb[0].mxu0
        %2245 = vdwg.mxu0
        %2246 = vst.msk [vmem:[%s336] sm:$0xff] %vm543, %v1671
        %2247 = vst.msk [vmem:[%s336 + $0x8] sm:$0xff] %vm543, %v1676
        %2248 = vst.msk [vmem:[%s336 + $0x10] sm:$0xff] %vm543, %v1752
        %2249 = vst.msk [vmem:[%s336 + $0x18] sm:$0xff] %vm543, %v1757
        %2250 = vst.msk [vmem:[%s336 + $0x20] sm:$0xff] %vm543, %v1833
        %2251 = vst.msk [vmem:[%s336 + $0x28] sm:$0xff] %vm543, %v1838
        %2252 = vst.msk [vmem:[%s336 + $0x30] sm:$0xff] %vm543, %v1914
        %2253 = vst.msk [vmem:[%s336 + $0x38] sm:$0xff] %vm543, %v1919
        %2254 = vst.msk [vmem:[%s336 + $0x40] sm:$0xff] %vm543, %v1995
        %2255 = vst.msk [vmem:[%s336 + $0x48] sm:$0xff] %vm543, %v2000
        %2256 = vst.msk [vmem:[%s336 + $0x50] sm:$0xff] %vm543, %v2076
        %2257 = vst.msk [vmem:[%s336 + $0x58] sm:$0xff] %vm543, %v2081
        %2258 = vst.msk [vmem:[%s336 + $0x60] sm:$0xff] %vm543, %v2157
        %2259 = vst.msk [vmem:[%s336 + $0x68] sm:$0xff] %vm543, %v2162
        %2260 = vst.msk [vmem:[%s336 + $0x70] sm:$0xff] %vm543, %v2238
        %2261 = vst.msk [vmem:[%s336 + $0x78] sm:$0xff] %vm543, %v2243
        %s2262 = sand.u32 %s192, 1
        %s2263 = scalar_lea.sflag [#allocation4], %s2262
        %s2264 = sand.u32 %s192, 1
        %s2265 = smul.addr %s2264, 128
        %s2266 = scalar_lea.vmem [#allocation7], %s2265
        // Predicated region
        $region57: #{tpu_custom_call.1} parent=47 // pred_check
          %p2267 = pneg %p202
        $region58: #{tpu_custom_call.1} parent=47 // pred_check_branch
          %2269 = sbr.rel (%p2267) target = $region60
        $region59: #{tpu_custom_call.1} parent=47 // pred_region
          %s2271 = ssub.s32 2048, 2048
          %2272 = vsyncadd %s2263, %s2271
          %s2273 = smul.addr %s27, 16
          %s2274 = smul.addr %s2273, 128
          %s2275 = scalar_lea.hbm %s7, %s2274
          %s2276 = sshll.u32 %s2266, 4
          %s2277 = int_to_ptr.vmem [resolvable:$true] %s2276
          %2282 = dma.vmem_to_hbm [thread:$0]  %s2277, 2048, %s2275, %s2263, 128, 128, 8
        $region60: #{tpu_custom_call.1} parent=47 // pred_fallthru
          _
      $region48: #{tpu_custom_call.1} parent=5 // pred_fallthru
        _
      %p2283 = scmp.le.s32.totalorder 2, %s22
      // Predicated region
      $region61: #{tpu_custom_call.1} parent=5 // pred_check
        %p2284 = pneg %p2283
      $region62: #{tpu_custom_call.1} parent=5 // pred_check_branch
        %2286 = sbr.rel (%p2284) target = $region64
      $region63: #{tpu_custom_call.1} parent=5 // pred_region
        %s2287 = ssub.s32 %s22, 2
        // Predicated region
        $region65: #{tpu_custom_call.1} parent=63 // pred_check
          %p2288 = pneg %p208
        $region66: #{tpu_custom_call.1} parent=63 // pred_check_branch
          %2290 = sbr.rel (%p2288) target = $region68
        $region67: #{tpu_custom_call.1} parent=63 // pred_region
          %s2291 = sand.u32 %s193, 1
          %s2292 = scalar_lea.sflag [#allocation4], %s2291
          %s2293 = sand.u32 %s193, 1
          %s2294 = smul.addr %s2293, 128
          %s2295 = scalar_lea.vmem [#allocation7], %s2294
          %2296 = dma.done %s2292, 2048
        $region68: #{tpu_custom_call.1} parent=63 // pred_fallthru
          _
      $region64: #{tpu_custom_call.1} parent=5 // pred_fallthru
        _
    $region6: #{tpu_custom_call.1} parent=1 // loop_footer
      %s26 = sadd.s32 1, %s22
    $region7: #{tpu_custom_call.1} parent=1 // loop_footer_branch
      %21 = sbr.rel target = $region3
    $region8: #{tpu_custom_call.1} parent=1 // loop_exit
      _
    %2297 = vsyncpa [#allocation3], 1
    %s2298 = scalar_lea.sflag [#allocation3], 1
    %2299 = vsyncpa %s2298, 1
    %2300 = vsyncpa [#allocation6], 1
    %s2301 = scalar_lea.sflag [#allocation6], 1
    %2302 = vsyncpa %s2301, 1
    %2303 = vsyncpa [#allocation4], 1
    %s2304 = scalar_lea.sflag [#allocation4], 1
    %2305 = vsyncpa %s2304, 1

</llo_original>
